<compile_context>
chip_gen: v5e
topology: v5e:2x2
jax: 0.10.0
libtpu: 0.0.40
codegen_flags: <defaults>
</compile_context>

<pallas_src>
import functools

import jax
import jax.numpy as jnp
from jax.experimental import pallas as pl
from jax.experimental.pallas import tpu as pltpu


# ---------------------------------------------------------------------------
# Fused multi-layer GCN kernel.
# Grid = (layer, row_tile, col_tile), all sequential ("arbitrary"): layers are
# fused through the shared XW / h VMEM scratches, so neither the layer nor the
# row axis can be sharded across TensorCores.
# ---------------------------------------------------------------------------
def _fused_gcn_kernel(adj_ref, x_ref, w_ref, scale_ref, shift_ref, o_ref,
                      xw_ref, h_ref, acc_ref, *, tm, tk):
    layer = pl.program_id(0)
    i = pl.program_id(1)
    k = pl.program_id(2)
    n_layers = pl.num_programs(0)
    nk = pl.num_programs(2)

    koff = pl.multiple_of(k * tk, tk)

    # --- Distributed per-layer XW (no serial bubble at layer start) ---------
    # During the first row sweep (i == 0) of every layer, produce exactly the
    # XW column block this step consumes; the (tk, C) @ (C, C) matmul then
    # overlaps the adjacency-tile DMA the kernel is otherwise waiting on.
    # Layer 0 reads the streamed node-feature tile; deeper layers read the
    # previous layer's activations from the h scratch.
    @pl.when(jnp.logical_and(i == 0, layer == 0))
    def _():
        xw_ref[pl.ds(koff, tk), :] = jnp.dot(
            x_ref[...], w_ref[0],
            preferred_element_type=jnp.float32).astype(xw_ref.dtype)

    @pl.when(jnp.logical_and(i == 0, layer > 0))
    def _():
        xw_ref[pl.ds(koff, tk), :] = jnp.dot(
            h_ref[pl.ds(koff, tk), :], w_ref[0],
            preferred_element_type=jnp.float32).astype(xw_ref.dtype)

    # --- Accumulate A_hat[i, k] @ XW[k] over adjacency column tiles (f32) ---
    @pl.when(k == 0)
    def _():
        acc_ref[...] = jnp.zeros_like(acc_ref)

    acc_ref[...] += jnp.dot(adj_ref[...], xw_ref[pl.ds(koff, tk), :],
                            preferred_element_type=jnp.float32)

    # --- Finalize row tile: fused (GCNConv bias + eval BN) affine, ReLU -----
    last_k = k == nk - 1
    is_last_layer = layer == n_layers - 1

    @pl.when(jnp.logical_and(last_k, is_last_layer))
    def _():
        o_ref[...] = (acc_ref[...] * scale_ref[0]
                      + shift_ref[0]).astype(o_ref.dtype)

    @pl.when(jnp.logical_and(last_k, jnp.logical_not(is_last_layer)))
    def _():
        # Hidden layer: only the h scratch is written (the HBM output store
        # here was dead work and has been removed).  Dropout = identity (eval).
        h = jnp.maximum(acc_ref[...] * scale_ref[0] + shift_ref[0], 0.0)
        ioff = pl.multiple_of(i * tm, tm)
        h_ref[pl.ds(ioff, tm), :] = h.astype(h_ref.dtype)


# ---------------------------------------------------------------------------
# Wrapper: padding, bf16 casts, bias folding, BlockSpecs, VMEM budgeting.
# ---------------------------------------------------------------------------
def _round_up(v, m):
    return -(-v // m) * m


def _pad2d(a, rows, cols, dtype):
    out = jnp.zeros((rows, cols), dtype)
    return out.at[:a.shape[0], :a.shape[1]].set(a.astype(dtype))


def _pad_vec(v, c_pad):
    return jnp.zeros((1, c_pad), jnp.float32).at[0, :v.shape[0]].set(
        v.astype(jnp.float32))


def fused_gcn_forward(x, adj, params):
    """x: [N, C_in] f32; adj: [N, N] dense normalized adjacency (precomputed);
    params: {'w': [W_l], 'b': [b_l], 'bn_scale': [...], 'bn_shift': [...]}."""
    n = x.shape[0]
    ws, bs = params["w"], params["b"]
    n_layers = len(ws)
    out_c = ws[-1].shape[1]

    # One lane-dense channel width (multiple of 128) shared by every layer.
    c_pad = _round_up(max([w.shape[0] for w in ws] + [w.shape[1] for w in ws]),
                      128)

    # Adjacency tiling.  Small graphs: a single tile with a constant block
    # index, so A_hat is DMA'd once and stays VMEM-resident across all layers
    # (its HBM stream is paid exactly once).  Larger graphs: 1024x1024 bf16
    # tiles (2 MiB each) streamed with 3-deep buffering.
    n128 = _round_up(n, 128)
    if n128 <= 2048:
        n_pad = n128
        tm = tk = n_pad
    else:
        tm = tk = 1024
        n_pad = _round_up(n, 1024)
    ni, nk = n_pad // tm, n_pad // tk

    # bf16 inputs; all accumulation inside the kernel is f32.
    adj_p = _pad2d(adj, n_pad, n_pad, jnp.bfloat16)
    x_p = _pad2d(x, n_pad, c_pad, jnp.bfloat16)

    # Per-layer weights and fused epilogue affine, stacked along a layer axis.
    w_stack = jnp.stack([_pad2d(w, c_pad, c_pad, jnp.bfloat16) for w in ws])
    scales, shifts = [], []
    for l in range(n_layers):
        if l < n_layers - 1:
            s = params["bn_scale"][l]
            t = bs[l] * s + params["bn_shift"][l]   # fold conv bias into BN shift
        else:
            s = jnp.ones((ws[l].shape[1],), jnp.float32)
            t = bs[l]                               # last layer: scale=1, shift=b
        scales.append(_pad_vec(s, c_pad))
        shifts.append(_pad_vec(t, c_pad))
    scale_stack = jnp.stack(scales)                 # [L, 1, c_pad]
    shift_stack = jnp.stack(shifts)                 # [L, 1, c_pad]

    grid = (n_layers, ni, nk)

    # Adjacency BlockSpec: streamed over (row, col) tiles.  3-deep buffering
    # keeps the DMA queue full across the XW steps and finalize epilogues.
    adj_spec = pl.BlockSpec((tm, tk), lambda l, i, k: (i, k))
    if ni * nk > 1 and hasattr(pl, "Buffered"):
        try:
            adj_spec = pl.BlockSpec((tm, tk), lambda l, i, k: (i, k),
                                    pipeline_mode=pl.Buffered(3))
        except TypeError:
            pass  # older jax without pipeline_mode kwarg: default buffering

    # Node features: one (tk, c_pad) tile, fetched only during the
    # (layer 0, i == 0) sweep; the block index collapses to 0 afterwards so
    # no further DMAs are issued and x is never fully resident.
    x_spec = pl.BlockSpec(
        (tk, c_pad),
        lambda l, i, k: (jnp.where(jnp.logical_and(l == 0, i == 0), k, 0), 0))

    # VMEM budget (explicit limit; default scoped limit is 16 MiB on v5e).
    adj_bufs = 3 if ni * nk > 1 else 2
    vmem_needed = (adj_bufs * tm * tk * 2          # adjacency buffers (bf16)
                   + 2 * tk * c_pad * 2            # streamed x tiles
                   + 2 * c_pad * c_pad * 2         # weights
                   + 4 * 2 * c_pad * 4             # scale / shift
                   + 2 * tm * c_pad * 4            # output tiles (f32)
                   + 2 * n_pad * c_pad * 2         # XW + h scratches (bf16)
                   + tm * c_pad * 4)               # f32 accumulator
    try:
        cap = int(getattr(pltpu.get_tpu_info(), "vmem_capacity_bytes",
                          128 * 1024 * 1024))
    except Exception:
        cap = 128 * 1024 * 1024
    vmem_limit = min(max(32 * 1024 * 1024, int(vmem_needed * 1.25) + (4 << 20)),
                     int(cap * 9 // 10))

    flops = 2 * n_layers * (n_pad * c_pad * c_pad + n_pad * n_pad * c_pad)
    adj_reads = 1 if ni * nk == 1 else n_layers     # resident vs re-streamed
    bytes_accessed = (adj_reads * n_pad * n_pad * 2  # adjacency
                      + n_pad * c_pad * 2            # x (streamed once)
                      + n_layers * c_pad * c_pad * 2  # weights
                      + n_layers * n_pad * c_pad * 4)  # output flushed per layer

    kernel = functools.partial(_fused_gcn_kernel, tm=tm, tk=tk)

    out_p = pl.pallas_call(
        kernel,
        out_shape=jax.ShapeDtypeStruct((n_pad, c_pad), jnp.float32),
        grid_spec=pltpu.PrefetchScalarGridSpec(
            num_scalar_prefetch=0,
            grid=grid,
            in_specs=[
                adj_spec,
                x_spec,
                # Per-layer weight / fused scale / fused shift.
                pl.BlockSpec((1, c_pad, c_pad), lambda l, i, k: (l, 0, 0)),
                pl.BlockSpec((1, 1, c_pad), lambda l, i, k: (l, 0, 0)),
                pl.BlockSpec((1, 1, c_pad), lambda l, i, k: (l, 0, 0)),
            ],
            out_specs=pl.BlockSpec((tm, c_pad), lambda l, i, k: (i, 0)),
            scratch_shapes=[
                pltpu.VMEM((n_pad, c_pad), jnp.bfloat16),   # XW of current layer
                pltpu.VMEM((n_pad, c_pad), jnp.bfloat16),   # previous activations
                pltpu.VMEM((tm, c_pad), jnp.float32),       # f32 accumulator
            ]),
        # All axes sequential: layers and the reduction must run in order, and
        # the row axis cannot be split across TensorCores because the fused
        # layers share the XW / h VMEM scratches.
        compiler_params=pltpu.CompilerParams(
            dimension_semantics=("arbitrary", "arbitrary", "arbitrary"),
            vmem_limit_bytes=vmem_limit),
        cost_estimate=pl.CostEstimate(flops=flops, transcendentals=0,
                                      bytes_accessed=bytes_accessed),
    )(adj_p, x_p, w_stack, scale_stack, shift_stack)

    return out_p[:n, :out_c]


# ---------------------------------------------------------------------------
# Plain-JAX glue: GCN-normalized dense adjacency (gcn_norm semantics: add
# remaining self-loops, symmetric D^-1/2 normalization; duplicate edges
# accumulate weight, matching scatter-add).  Built once per graph.
# ---------------------------------------------------------------------------
def build_norm_adj(edge_index, num_nodes):
    src, dst = edge_index[0], edge_index[1]
    a = jnp.zeros((num_nodes, num_nodes), jnp.float32).at[dst, src].add(1.0)
    diag = jnp.diagonal(a)
    a = a + jnp.diag(jnp.where(diag == 0, 1.0, 0.0))   # remaining self-loops
    deg = a.sum(axis=1)
    dinv = jnp.where(deg > 0, 1.0 / jnp.sqrt(deg), 0.0)
    return dinv[:, None] * a * dinv[None, :]


def glorot(key, fan_in, fan_out):
    bound = jnp.sqrt(6.0 / (fan_in + fan_out))
    return jax.random.uniform(key, (fan_in, fan_out), jnp.float32, -bound, bound)


def gcn_reference(x, adj, params):
    """Pure-JAX reference mirroring the kernel's bf16 input quantization."""
    q = lambda a: a.astype(jnp.bfloat16)
    f = lambda a: a.astype(jnp.float32)
    adj_q = q(adj)
    h = q(x)
    n_layers = len(params["w"])
    acc = None
    for l in range(n_layers):
        xw = q(jnp.dot(f(h), f(q(params["w"][l]))))
        acc = jnp.dot(f(adj_q), f(xw)) + params["b"][l]
        if l < n_layers - 1:
            acc = acc * params["bn_scale"][l] + params["bn_shift"][l]
            h = q(jnp.maximum(acc, 0.0))
    return acc


# TODO(synk): training-mode F.dropout (stochastic masking) and training-mode
# BatchNorm (batch statistics) are not implemented; eval semantics only.

if __name__ == "__main__":
    key = jax.random.PRNGKey(0)
    N, E = 16, 40
    in_c, hid_c, out_c = 8, 32, 4            # num_layers = 2

    k_x, k_src, k_dst, k_w1, k_w2, k_b1, k_b2, k_g, k_be = jax.random.split(key, 9)
    x = jax.random.normal(k_x, (N, in_c), jnp.float32)
    src = jax.random.randint(k_src, (E,), 0, N)
    dst = jax.random.randint(k_dst, (E,), 0, N)
    edge_index = jnp.stack([src, dst]).astype(jnp.int32)

    eps = 1e-5
    # Eval-mode BatchNorm1d with running_mean=0, running_var=1 (fresh reset);
    # non-trivial gamma/beta/biases to exercise the fused epilogue.
    bn_gamma = 1.0 + 0.1 * jax.random.normal(k_g, (hid_c,), jnp.float32)
    bn_beta = 0.1 * jax.random.normal(k_be, (hid_c,), jnp.float32)
    bn_scale = bn_gamma / jnp.sqrt(1.0 + eps)
    bn_shift = bn_beta

    params = {
        "w": [glorot(k_w1, in_c, hid_c), glorot(k_w2, hid_c, out_c)],
        "b": [0.1 * jax.random.normal(k_b1, (hid_c,), jnp.float32),
              0.1 * jax.random.normal(k_b2, (out_c,), jnp.float32)],
        "bn_scale": [bn_scale],
        "bn_shift": [bn_shift],
    }

    adj = build_norm_adj(edge_index, N)      # hoisted: built once per graph
    out = fused_gcn_forward(x, adj, params)
    jax.block_until_ready(out)

    ref = gcn_reference(x, adj, params)
    assert out.shape == (N, out_c) and out.dtype == jnp.float32
    assert bool(jnp.allclose(out, ref, rtol=5e-2, atol=5e-2)), (
        "max abs err = %f" % float(jnp.max(jnp.abs(out - ref))))
    print("KERNEL_OK")
</pallas_src>

<mosaic_0001>
module attributes {stable_mosaic.version = 11 : i64} {
  func.func @_fused_gcn_kernel(%arg0: i32, %arg1: i32, %arg2: i32, %arg3: memref<128x128xbf16, #tpu.memory_space<vmem>>, %arg4: memref<128x128xbf16, #tpu.memory_space<vmem>>, %arg5: memref<1x128x128xbf16, #tpu.memory_space<vmem>>, %arg6: memref<1x1x128xf32, #tpu.memory_space<vmem>>, %arg7: memref<1x1x128xf32, #tpu.memory_space<vmem>>, %arg8: memref<128x128xf32, #tpu.memory_space<vmem>>, %arg9: memref<128x128xbf16, #tpu.memory_space<vmem>>, %arg10: memref<128x128xbf16, #tpu.memory_space<vmem>>, %arg11: memref<128x128xf32, #tpu.memory_space<vmem>>) attributes {dimension_semantics = [#tpu.dimension_semantics<arbitrary>, #tpu.dimension_semantics<arbitrary>, #tpu.dimension_semantics<arbitrary>], iteration_bounds = array<i64: 2, 1, 1>, scalar_prefetch = 0 : i64, scratch_operands = 3 : i64, tpu.core_type = #tpu.core_type<tc>, window_params = [{transform_indices = @transform_0, window_bounds = array<i64: 128, 128>}, {transform_indices = @transform_1, window_bounds = array<i64: 128, 128>}, {transform_indices = @transform_2, window_bounds = array<i64: 1, 128, 128>}, {transform_indices = @transform_3, window_bounds = array<i64: 1, 1, 128>}, {transform_indices = @transform_4, window_bounds = array<i64: 1, 1, 128>}, {transform_indices = @transform_5, window_bounds = array<i64: 128, 128>}]} {
    %c128_i32 = arith.constant 128 : i32
    %0 = arith.muli %arg2, %c128_i32 : i32
    %1 = tpu.assume_multiple %0, 128 : i32
    %c0_i32 = arith.constant 0 : i32
    %2 = arith.cmpi eq, %arg1, %c0_i32 : i32
    %c0_i32_0 = arith.constant 0 : i32
    %3 = arith.cmpi eq, %arg0, %c0_i32_0 : i32
    %4 = arith.andi %2, %3 : i1
    %5 = arith.extui %4 : i1 to i32
    %c0_i32_1 = arith.constant 0 : i32
    %6 = arith.cmpi ne, %5, %c0_i32_1 : i32
    scf.if %6 {
      %c0_16 = arith.constant 0 : index
      %c0_17 = arith.constant 0 : index
      %31 = vector.load %arg4[%c0_16, %c0_17] : memref<128x128xbf16, #tpu.memory_space<vmem>>, vector<128x128xbf16>
      %c0_18 = arith.constant 0 : index
      %c0_19 = arith.constant 0 : index
      %c0_20 = arith.constant 0 : index
      %32 = vector.load %arg5[%c0_18, %c0_19, %c0_20] : memref<1x128x128xbf16, #tpu.memory_space<vmem>>, vector<1x128x128xbf16>
      %33 = vector.shape_cast %32 : vector<1x128x128xbf16> to vector<128x128xbf16>
      %cst_21 = arith.constant dense<0.000000e+00> : vector<128x128xf32>
      %34 = tpu.matmul %31, %33, %cst_21 {dimension_numbers = #tpu.dot_dimension_numbers<[1], [0], [0], [1], [0, 0, 1, 1], [], []>} : vector<128x128xbf16>, vector<128x128xbf16>, vector<128x128xf32> -> vector<128x128xf32>
      %35 = arith.truncf %34 : vector<128x128xf32> to vector<128x128xbf16>
      %36 = arith.index_cast %1 : i32 to index
      %c0_22 = arith.constant 0 : index
      %37 = vector.load %arg9[%36, %c0_22] : memref<128x128xbf16, #tpu.memory_space<vmem>>, vector<128x128xbf16>
      tpu.vector_store %arg9[%36, %c0_22], %35 {strides = array<i32>} : memref<128x128xbf16, #tpu.memory_space<vmem>>, vector<128x128xbf16>,
    } else {
    }
    %c0_i32_2 = arith.constant 0 : i32
    %7 = arith.cmpi eq, %arg1, %c0_i32_2 : i32
    %c0_i32_3 = arith.constant 0 : i32
    %8 = arith.cmpi sgt, %arg0, %c0_i32_3 : i32
    %9 = arith.andi %7, %8 : i1
    %10 = arith.extui %9 : i1 to i32
    %c0_i32_4 = arith.constant 0 : i32
    %11 = arith.cmpi ne, %10, %c0_i32_4 : i32
    scf.if %11 {
      %31 = arith.index_cast %1 : i32 to index
      %c0_16 = arith.constant 0 : index
      %32 = vector.load %arg10[%31, %c0_16] : memref<128x128xbf16, #tpu.memory_space<vmem>>, vector<128x128xbf16>
      %c0_17 = arith.constant 0 : index
      %c0_18 = arith.constant 0 : index
      %c0_19 = arith.constant 0 : index
      %33 = vector.load %arg5[%c0_17, %c0_18, %c0_19] : memref<1x128x128xbf16, #tpu.memory_space<vmem>>, vector<1x128x128xbf16>
      %34 = vector.shape_cast %33 : vector<1x128x128xbf16> to vector<128x128xbf16>
      %cst_20 = arith.constant dense<0.000000e+00> : vector<128x128xf32>
      %35 = tpu.matmul %32, %34, %cst_20 {dimension_numbers = #tpu.dot_dimension_numbers<[1], [0], [0], [1], [0, 0, 1, 1], [], []>} : vector<128x128xbf16>, vector<128x128xbf16>, vector<128x128xf32> -> vector<128x128xf32>
      %36 = arith.truncf %35 : vector<128x128xf32> to vector<128x128xbf16>
      %37 = arith.index_cast %1 : i32 to index
      %c0_21 = arith.constant 0 : index
      %38 = vector.load %arg9[%37, %c0_21] : memref<128x128xbf16, #tpu.memory_space<vmem>>, vector<128x128xbf16>
      tpu.vector_store %arg9[%37, %c0_21], %36 {strides = array<i32>} : memref<128x128xbf16, #tpu.memory_space<vmem>>, vector<128x128xbf16>,
    } else {
    }
    %c0_i32_5 = arith.constant 0 : i32
    %12 = arith.cmpi eq, %arg2, %c0_i32_5 : i32
    %13 = arith.extui %12 : i1 to i32
    %c0_i32_6 = arith.constant 0 : i32
    %14 = arith.cmpi ne, %13, %c0_i32_6 : i32
    scf.if %14 {
      %cst_16 = arith.constant 0.000000e+00 : f32
      %31 = vector.broadcast %cst_16 : f32 to vector<128x128xf32>
      %c0_17 = arith.constant 0 : index
      %c0_18 = arith.constant 0 : index
      %32 = vector.load %arg11[%c0_17, %c0_18] : memref<128x128xf32, #tpu.memory_space<vmem>>, vector<128x128xf32>
      tpu.vector_store %arg11[%c0_17, %c0_18], %31 {strides = array<i32>} : memref<128x128xf32, #tpu.memory_space<vmem>>, vector<128x128xf32>,
    } else {
    }
    %c0 = arith.constant 0 : index
    %c0_7 = arith.constant 0 : index
    %15 = vector.load %arg11[%c0, %c0_7] : memref<128x128xf32, #tpu.memory_space<vmem>>, vector<128x128xf32>
    %c0_8 = arith.constant 0 : index
    %c0_9 = arith.constant 0 : index
    %16 = vector.load %arg3[%c0_8, %c0_9] : memref<128x128xbf16, #tpu.memory_space<vmem>>, vector<128x128xbf16>
    %17 = arith.index_cast %1 : i32 to index
    %c0_10 = arith.constant 0 : index
    %18 = vector.load %arg9[%17, %c0_10] : memref<128x128xbf16, #tpu.memory_space<vmem>>, vector<128x128xbf16>
    %cst = arith.constant dense<0.000000e+00> : vector<128x128xf32>
    %19 = tpu.matmul %16, %18, %cst {dimension_numbers = #tpu.dot_dimension_numbers<[1], [0], [0], [1], [0, 0, 1, 1], [], []>} : vector<128x128xbf16>, vector<128x128xbf16>, vector<128x128xf32> -> vector<128x128xf32>
    %20 = arith.addf %15, %19 : vector<128x128xf32>
    %c0_11 = arith.constant 0 : index
    %c0_12 = arith.constant 0 : index
    %21 = vector.load %arg11[%c0_11, %c0_12] : memref<128x128xf32, #tpu.memory_space<vmem>>, vector<128x128xf32>
    tpu.vector_store %arg11[%c0_11, %c0_12], %20 {strides = array<i32>} : memref<128x128xf32, #tpu.memory_space<vmem>>, vector<128x128xf32>,
    %c0_i32_13 = arith.constant 0 : i32
    %22 = arith.cmpi eq, %arg2, %c0_i32_13 : i32
    %c1_i32 = arith.constant 1 : i32
    %23 = arith.cmpi eq, %arg0, %c1_i32 : i32
    %24 = arith.andi %22, %23 : i1
    %25 = arith.extui %24 : i1 to i32
    %c0_i32_14 = arith.constant 0 : i32
    %26 = arith.cmpi ne, %25, %c0_i32_14 : i32
    scf.if %26 {
      %c0_16 = arith.constant 0 : index
      %c0_17 = arith.constant 0 : index
      %31 = vector.load %arg11[%c0_16, %c0_17] : memref<128x128xf32, #tpu.memory_space<vmem>>, vector<128x128xf32>
      %c0_18 = arith.constant 0 : index
      %c0_19 = arith.constant 0 : index
      %c0_20 = arith.constant 0 : index
      %32 = vector.load %arg6[%c0_18, %c0_19, %c0_20] : memref<1x1x128xf32, #tpu.memory_space<vmem>>, vector<1x1x128xf32>
      %33 = vector.shape_cast %32 : vector<1x1x128xf32> to vector<1x128xf32>
      %34 = vector.broadcast %33 : vector<1x128xf32> to vector<128x128xf32>
      %35 = arith.mulf %31, %34 : vector<128x128xf32>
      %c0_21 = arith.constant 0 : index
      %c0_22 = arith.constant 0 : index
      %c0_23 = arith.constant 0 : index
      %36 = vector.load %arg7[%c0_21, %c0_22, %c0_23] : memref<1x1x128xf32, #tpu.memory_space<vmem>>, vector<1x1x128xf32>
      %37 = vector.shape_cast %36 : vector<1x1x128xf32> to vector<1x128xf32>
      %38 = vector.broadcast %37 : vector<1x128xf32> to vector<128x128xf32>
      %39 = arith.addf %35, %38 : vector<128x128xf32>
      %c0_24 = arith.constant 0 : index
      %c0_25 = arith.constant 0 : index
      %40 = vector.load %arg8[%c0_24, %c0_25] : memref<128x128xf32, #tpu.memory_space<vmem>>, vector<128x128xf32>
      tpu.vector_store %arg8[%c0_24, %c0_25], %39 {strides = array<i32>} : memref<128x128xf32, #tpu.memory_space<vmem>>, vector<128x128xf32>,
    } else {
    }
    %true = arith.constant true
    %27 = arith.xori %23, %true : i1
    %28 = arith.andi %22, %27 : i1
    %29 = arith.extui %28 : i1 to i32
    %c0_i32_15 = arith.constant 0 : i32
    %30 = arith.cmpi ne, %29, %c0_i32_15 : i32
    scf.if %30 {
      %c0_16 = arith.constant 0 : index
      %c0_17 = arith.constant 0 : index
      %31 = vector.load %arg11[%c0_16, %c0_17] : memref<128x128xf32, #tpu.memory_space<vmem>>, vector<128x128xf32>
      %c0_18 = arith.constant 0 : index
      %c0_19 = arith.constant 0 : index
      %c0_20 = arith.constant 0 : index
      %32 = vector.load %arg6[%c0_18, %c0_19, %c0_20] : memref<1x1x128xf32, #tpu.memory_space<vmem>>, vector<1x1x128xf32>
      %33 = vector.shape_cast %32 : vector<1x1x128xf32> to vector<1x128xf32>
      %34 = vector.broadcast %33 : vector<1x128xf32> to vector<128x128xf32>
      %35 = arith.mulf %31, %34 : vector<128x128xf32>
      %c0_21 = arith.constant 0 : index
      %c0_22 = arith.constant 0 : index
      %c0_23 = arith.constant 0 : index
      %36 = vector.load %arg7[%c0_21, %c0_22, %c0_23] : memref<1x1x128xf32, #tpu.memory_space<vmem>>, vector<1x1x128xf32>
      %37 = vector.shape_cast %36 : vector<1x1x128xf32> to vector<1x128xf32>
      %38 = vector.broadcast %37 : vector<1x128xf32> to vector<128x128xf32>
      %39 = arith.addf %35, %38 : vector<128x128xf32>
      %cst_24 = arith.constant 0.000000e+00 : f32
      %40 = vector.broadcast %cst_24 : f32 to vector<128x128xf32>
      %41 = arith.maximumf %39, %40 : vector<128x128xf32>
      %c128_i32_25 = arith.constant 128 : i32
      %42 = arith.muli %arg1, %c128_i32_25 : i32
      %43 = tpu.assume_multiple %42, 128 : i32
      %44 = arith.truncf %41 : vector<128x128xf32> to vector<128x128xbf16>
      %45 = arith.index_cast %43 : i32 to index
      %c0_26 = arith.constant 0 : index
      %46 = vector.load %arg10[%45, %c0_26] : memref<128x128xbf16, #tpu.memory_space<vmem>>, vector<128x128xbf16>
      tpu.vector_store %arg10[%45, %c0_26], %44 {strides = array<i32>} : memref<128x128xbf16, #tpu.memory_space<vmem>>, vector<128x128xbf16>,
    } else {
    }
    return
  }
  func.func @transform_0(%arg0: i32, %arg1: i32, %arg2: i32) -> (i32, i32) {
    %c0_i32 = arith.constant 0 : i32
    return %arg1, %arg2 : i32, i32
  }
  func.func @transform_1(%arg0: i32, %arg1: i32, %arg2: i32) -> (i32, i32) {
    %c0_i32 = arith.constant 0 : i32
    %0 = arith.cmpi eq, %arg0, %c0_i32 : i32
    %c0_i32_0 = arith.constant 0 : i32
    %1 = arith.cmpi eq, %arg1, %c0_i32_0 : i32
    %2 = arith.andi %0, %1 : i1
    %c0_i32_1 = arith.constant 0 : i32
    %3 = arith.select %2, %arg2, %c0_i32_1 : i32
    %c0_i32_2 = arith.constant 0 : i32
    %c0_i32_3 = arith.constant 0 : i32
    return %3, %c0_i32_2 : i32, i32
  }
  func.func @transform_2(%arg0: i32, %arg1: i32, %arg2: i32) -> (i32, i32, i32) {
    %c0_i32 = arith.constant 0 : i32
    %c0_i32_0 = arith.constant 0 : i32
    %c0_i32_1 = arith.constant 0 : i32
    return %arg0, %c0_i32, %c0_i32_0 : i32, i32, i32
  }
  func.func @transform_3(%arg0: i32, %arg1: i32, %arg2: i32) -> (i32, i32, i32) {
    %c0_i32 = arith.constant 0 : i32
    %c0_i32_0 = arith.constant 0 : i32
    %c0_i32_1 = arith.constant 0 : i32
    return %arg0, %c0_i32, %c0_i32_0 : i32, i32, i32
  }
  func.func @transform_4(%arg0: i32, %arg1: i32, %arg2: i32) -> (i32, i32, i32) {
    %c0_i32 = arith.constant 0 : i32
    %c0_i32_0 = arith.constant 0 : i32
    %c0_i32_1 = arith.constant 0 : i32
    return %arg0, %c0_i32, %c0_i32_0 : i32, i32, i32
  }
  func.func @transform_5(%arg0: i32, %arg1: i32, %arg2: i32) -> (i32, i32) {
    %c0_i32 = arith.constant 0 : i32
    %c0_i32_0 = arith.constant 0 : i32
    return %arg1, %c0_i32 : i32, i32
  }
}

</mosaic_0001>

<llo_original>
// kernel: tpu_custom_call.1
$region0: #{tpu_custom_call.1}
  #allocation0 [shape = 'u32[]', space=smem, size = 0x4, offset = 0x4, fixed_abs, tag = 'smem constant byte address 0x4 - core index']
  #allocation1 [shape = 'u32[72,128]{1,0:T(1,128)}', space=vmem, size = 0x9000, scoped, tag = 'internal scratch']
  #allocation2 [shape = 'bf16[128,128]{1,0:T(8,128)(2,1)}', space=vmem, size = 0x8000, scoped, tag = 'scratch operand']
  #allocation3 [shape = 'bf16[128,128]{1,0:T(8,128)(2,1)}', space=vmem, size = 0x8000, scoped, tag = 'scratch operand']
  #allocation4 [shape = 'f32[128,128]{1,0:T(8,128)}', space=vmem, size = 0x10000, scoped, tag = 'scratch operand']
  %s0 = inlined_call_operand.hbm [shape: bf16[128,128], index: 0, kind: input, shape index: {}]
  %s1 = inlined_call_operand.hbm [shape: bf16[128,128], index: 1, kind: input, shape index: {}]
  %s2 = inlined_call_operand.hbm [shape: bf16[2,128,128], index: 2, kind: input, shape index: {}]
  %s3 = inlined_call_operand.vmem [shape: f32[2,1,128], index: 3, kind: input, shape index: {}]
  %s4 = inlined_call_operand.hbm [shape: f32[2,1,128], index: 4, kind: input, shape index: {}]
  %s5 = inlined_call_operand.hbm [shape: f32[128,128], index: 5, kind: output, shape index: {}]
  %s6 = sld [smem:[#allocation0]]
  $region89: #{tpu_custom_call.1} parent=0
    _
  %s8 = ssub.s32 1, %s6
  %s9 = scalar_select 0, %s8, %s6
  $region1: #{tpu_custom_call.1} parent=0
    #allocation5 [shape = 'u8[32768]{0}', space=vmem, size = 0x8000, scoped, tag = 'input window, operand 0, single buffered']
    #allocation6 [shape = 's32[2]{0}', space=sflag, size = 0x8, scoped, tag = 'scoped memory for tpu_custom_call.1']
    #allocation7 [shape = 's32[2]{0}', space=sflag, size = 0x8, scoped, tag = 'scoped memory for tpu_custom_call.1']
    #allocation8 [shape = 'u8[65536]{0}', space=vmem, size = 0x10000, scoped, tag = 'input window, operand 1']
    #allocation9 [shape = 's32[2]{0}', space=sflag, size = 0x8, scoped, tag = 'scoped memory for tpu_custom_call.1']
    #allocation10 [shape = 'u8[65536]{0}', space=vmem, size = 0x10000, scoped, tag = 'input window, operand 2']
    #allocation11 [shape = 'u8[1024]{0}', space=vmem, size = 0x400, scoped, tag = 'input window, operand 4']
    #allocation12 [shape = 's32[2]{0}', space=sflag, size = 0x8, scoped, tag = 'scoped memory for tpu_custom_call.1']
    #allocation13 [shape = 'u8[65536]{0}', space=vmem, size = 0x10000, scoped, tag = 'output window, operand 0, single buffered']
    %10 = vsyncpa [#allocation6], 0
    %11 = vsyncpa [#allocation9], 0
    %s12 = scalar_lea.sflag [#allocation9], 1
    %13 = vsyncpa %s12, 0
    %14 = vsyncpa [#allocation12], 0
    %s15 = scalar_lea.sflag [#allocation12], 1
    %16 = vsyncpa %s15, 0
    %17 = vsyncpa [#allocation7], 0
    loop: start=0, step=1, limit=4
    $region2: #{tpu_custom_call.1} parent=1 // loop_pre_header
      _
    $region3: #{tpu_custom_call.1} parent=1 // loop_header
      %s19 = sphi 0, %s23
      %p20 = scmp.ge.s32.totalorder %s19, 4
      %s26 = sphi 0, %s45
      %s27 = sphi 0, %s41
      %s28 = sphi 0, %s37
      %s29 = sphi 0, %s26
      %s30 = sphi 0, %s27
      %s31 = sphi 0, %s28
      %s32 = sphi 0, %s29
      %s33 = sphi 0, %s30
      %s34 = sphi 0, %s31
      %s50 = sphi 0, %s52
      %s53 = sphi 0, %s50
      %s54 = sphi 0, %s53
      %s70 = sphi 0, %s54
      %s86 = sphi 0, %s88
      %s89 = sphi 0, %s86
      %s90 = sphi 0, %s89
      %s106 = sphi 0, %s90
      %s112 = sphi 0, %s114
      %s115 = sphi 0, %s112
      %s116 = sphi 0, %s115
      %s132 = sphi 0, %s116
      %s138 = sphi 0, %s140
      %s141 = sphi 0, %s138
      %s142 = sphi 0, %s141
      %s158 = sphi 0, %s142
      %s164 = sphi 0, %s166
      %s167 = sphi 0, %s164
      %s168 = sphi 0, %s167
      %s184 = sphi 0, %s168
      %s190 = sphi 0, %s192
      %s193 = sphi 0, %s190
      %s194 = sphi 0, %s193
      %s210 = sphi 0, %s194
    $region4: #{tpu_custom_call.1} parent=1 // loop_header_branch
      %22 = sbr.rel (%p20) target = $region8
    $region5: #{tpu_custom_call.1} parent=1 // loop_body
      %s24 = ssub.s32 %s19, 1
      %s25 = ssub.s32 %s19, 2
      %s35 = sadd.s32 1, %s28
      %p36 = scmp.ge.s32.totalorder %s35, 1
      %s37 = scalar_select %p36, 0, %s35
      %s38 = sadd.s32 1, %s27
      %s39 = scalar_select %p36, %s38, %s27
      %p40 = scmp.ge.s32.totalorder %s39, 1
      %s41 = scalar_select %p40, 0, %s39
      %s42 = sadd.s32 1, %s26
      %s43 = scalar_select %p40, %s42, %s26
      %p44 = scmp.ge.s32.totalorder %s43, 2
      %s45 = scalar_select %p44, 0, %s43
      %s46 = ssub.s32 %s27, %s41
      %s47 = ssub.s32 %s28, %s37
      %s48 = sor.u32 %s46, %s47
      %p49 = scmp.eq.s32.totalorder %s48, 0
      %s51 = sadd.s32 %s50, 1
      %s52 = scalar_select %p49, %s50, %s51
      %p55 = pneg %p49
      %p56 = scmp.eq.s32.totalorder %s19, 1
      %p57 = por %p55, %p56
      %p58 = scmp.ne.s32.totalorder %s50, %s53
      %p59 = scmp.eq.s32.totalorder %s19, 0
      %p60 = por %p58, %p59
      %p61 = scmp.ne.s32.totalorder %s50, %s53
      %p62 = scmp.eq.s32.totalorder %s24, 1
      %p63 = por %p61, %p62
      %p64 = scmp.ne.s32.totalorder %s53, %s54
      %p65 = scmp.eq.s32.totalorder %s24, 0
      %p66 = por %p64, %p65
      %p67 = scmp.ne.s32.totalorder %s53, %s54
      %p68 = scmp.eq.s32.totalorder %s25, 1
      %p69 = por %p67, %p68
      %p71 = scmp.ne.s32.totalorder %s54, %s70
      %p72 = scmp.eq.s32.totalorder %s25, 0
      %p73 = por %p71, %p72
      %p74 = scmp.eq.s32.totalorder %s26, 0
      %p75 = scmp.eq.s32.totalorder %s27, 0
      %p76 = pnand %p74, %p75
      %p77 = pneg %p76
      %s78 = scalar_select %p77, %s28, 0
      %p79 = scmp.eq.s32.totalorder %s45, 0
      %p80 = scmp.eq.s32.totalorder %s41, 0
      %p81 = pnand %p79, %p80
      %p82 = pneg %p81
      %s83 = scalar_select %p82, %s37, 0
      %s84 = ssub.s32 %s78, %s83
      %p85 = scmp.eq.s32.totalorder %s84, 0
      %s87 = sadd.s32 %s86, 1
      %s88 = scalar_select %p85, %s86, %s87
      %p91 = pneg %p85
      %p92 = scmp.eq.s32.totalorder %s19, 1
      %p93 = por %p91, %p92
      %p94 = scmp.ne.s32.totalorder %s86, %s89
      %p95 = scmp.eq.s32.totalorder %s19, 0
      %p96 = por %p94, %p95
      %p97 = scmp.ne.s32.totalorder %s86, %s89
      %p98 = scmp.eq.s32.totalorder %s24, 1
      %p99 = por %p97, %p98
      %p100 = scmp.ne.s32.totalorder %s89, %s90
      %p101 = scmp.eq.s32.totalorder %s24, 0
      %p102 = por %p100, %p101
      %p103 = scmp.ne.s32.totalorder %s89, %s90
      %p104 = scmp.eq.s32.totalorder %s25, 1
      %p105 = por %p103, %p104
      %p107 = scmp.ne.s32.totalorder %s90, %s106
      %p108 = scmp.eq.s32.totalorder %s25, 0
      %p109 = por %p107, %p108
      %s110 = ssub.s32 %s26, %s45
      %p111 = scmp.eq.s32.totalorder %s110, 0
      %s113 = sadd.s32 %s112, 1
      %s114 = scalar_select %p111, %s112, %s113
      %p117 = pneg %p111
      %p118 = scmp.eq.s32.totalorder %s19, 1
      %p119 = por %p117, %p118
      %p120 = scmp.ne.s32.totalorder %s112, %s115
      %p121 = scmp.eq.s32.totalorder %s19, 0
      %p122 = por %p120, %p121
      %p123 = scmp.ne.s32.totalorder %s112, %s115
      %p124 = scmp.eq.s32.totalorder %s24, 1
      %p125 = por %p123, %p124
      %p126 = scmp.ne.s32.totalorder %s115, %s116
      %p127 = scmp.eq.s32.totalorder %s24, 0
      %p128 = por %p126, %p127
      %p129 = scmp.ne.s32.totalorder %s115, %s116
      %p130 = scmp.eq.s32.totalorder %s25, 1
      %p131 = por %p129, %p130
      %p133 = scmp.ne.s32.totalorder %s116, %s132
      %p134 = scmp.eq.s32.totalorder %s25, 0
      %p135 = por %p133, %p134
      %s136 = ssub.s32 %s26, %s45
      %p137 = scmp.eq.s32.totalorder %s136, 0
      %s139 = sadd.s32 %s138, 1
      %s140 = scalar_select %p137, %s138, %s139
      %p143 = pneg %p137
      %p144 = scmp.eq.s32.totalorder %s19, 1
      %p145 = por %p143, %p144
      %p146 = scmp.ne.s32.totalorder %s138, %s141
      %p147 = scmp.eq.s32.totalorder %s19, 0
      %p148 = por %p146, %p147
      %p149 = scmp.ne.s32.totalorder %s138, %s141
      %p150 = scmp.eq.s32.totalorder %s24, 1
      %p151 = por %p149, %p150
      %p152 = scmp.ne.s32.totalorder %s141, %s142
      %p153 = scmp.eq.s32.totalorder %s24, 0
      %p154 = por %p152, %p153
      %p155 = scmp.ne.s32.totalorder %s141, %s142
      %p156 = scmp.eq.s32.totalorder %s25, 1
      %p157 = por %p155, %p156
      %p159 = scmp.ne.s32.totalorder %s142, %s158
      %p160 = scmp.eq.s32.totalorder %s25, 0
      %p161 = por %p159, %p160
      %s162 = ssub.s32 %s26, %s45
      %p163 = scmp.eq.s32.totalorder %s162, 0
      %s165 = sadd.s32 %s164, 1
      %s166 = scalar_select %p163, %s164, %s165
      %p169 = pneg %p163
      %p170 = scmp.eq.s32.totalorder %s19, 1
      %p171 = por %p169, %p170
      %p172 = scmp.ne.s32.totalorder %s164, %s167
      %p173 = scmp.eq.s32.totalorder %s19, 0
      %p174 = por %p172, %p173
      %p175 = scmp.ne.s32.totalorder %s164, %s167
      %p176 = scmp.eq.s32.totalorder %s24, 1
      %p177 = por %p175, %p176
      %p178 = scmp.ne.s32.totalorder %s167, %s168
      %p179 = scmp.eq.s32.totalorder %s24, 0
      %p180 = por %p178, %p179
      %p181 = scmp.ne.s32.totalorder %s167, %s168
      %p182 = scmp.eq.s32.totalorder %s25, 1
      %p183 = por %p181, %p182
      %p185 = scmp.ne.s32.totalorder %s168, %s184
      %p186 = scmp.eq.s32.totalorder %s25, 0
      %p187 = por %p185, %p186
      %s188 = ssub.s32 %s27, %s41
      %p189 = scmp.eq.s32.totalorder %s188, 0
      %s191 = sadd.s32 %s190, 1
      %s192 = scalar_select %p189, %s190, %s191
      %p195 = pneg %p189
      %p196 = scmp.eq.s32.totalorder %s19, 1
      %p197 = por %p195, %p196
      %p198 = scmp.ne.s32.totalorder %s190, %s193
      %p199 = scmp.eq.s32.totalorder %s19, 0
      %p200 = por %p198, %p199
      %p201 = scmp.ne.s32.totalorder %s190, %s193
      %p202 = scmp.eq.s32.totalorder %s24, 1
      %p203 = por %p201, %p202
      %p204 = scmp.ne.s32.totalorder %s193, %s194
      %p205 = scmp.eq.s32.totalorder %s24, 0
      %p206 = por %p204, %p205
      %p207 = scmp.ne.s32.totalorder %s193, %s194
      %p208 = scmp.eq.s32.totalorder %s25, 1
      %p209 = por %p207, %p208
      %p211 = scmp.ne.s32.totalorder %s194, %s210
      %p212 = scmp.eq.s32.totalorder %s25, 0
      %p213 = por %p211, %p212
      %p214 = scmp.le.s32.totalorder 1, %s19
      %p215 = scmp.lt.s32.totalorder %s19, 3
      %p216 = pnand %p214, %p215
      %p217 = pneg %p216
      // Predicated region
      $region9: #{tpu_custom_call.1} parent=5 // pred_check
        _
      $region10: #{tpu_custom_call.1} parent=5 // pred_check_branch
        %219 = sbr.rel (%p216) target = $region12
      $region11: #{tpu_custom_call.1} parent=5 // pred_region
        %s220 = ssub.s32 %s19, 1
        // Predicated region
        $region13: #{tpu_custom_call.1} parent=11 // pred_check
          %p221 = pneg %p66
        $region14: #{tpu_custom_call.1} parent=11 // pred_check_branch
          %223 = sbr.rel (%p221) target = $region16
        $region15: #{tpu_custom_call.1} parent=11 // pred_region
          %s224 = smul.u32 16, %s30
          %226 = vsyncadd [#allocation6], 0
          %s227 = sadd.s32 %s31, %s224
          %s228 = smul.addr %s227, 4
          %s229 = scalar_lea.hbm %s0, %s228
          %s230 = sshll.u32 %s229, 4
          %s231 = int_to_ptr.hbm [resolvable:$true] %s230
          %s232 = sshll.u32 [#allocation5], 4
          %s233 = int_to_ptr.vmem [resolvable:$true] %s232
          %238 = dma.hbm_to_vmem [thread:$0]  %s231, 1024, %s233, [#allocation6], 64, 64, 4
        $region16: #{tpu_custom_call.1} parent=11 // pred_fallthru
          _
      $region12: #{tpu_custom_call.1} parent=5 // pred_fallthru
        _
      %p239 = scmp.lt.s32.totalorder %s19, 2
      // Predicated region
      $region17: #{tpu_custom_call.1} parent=5 // pred_check
        %p240 = pneg %p239
      $region18: #{tpu_custom_call.1} parent=5 // pred_check_branch
        %242 = sbr.rel (%p240) target = $region20
      $region19: #{tpu_custom_call.1} parent=5 // pred_region
        // Predicated region
        $region21: #{tpu_custom_call.1} parent=19 // pred_check
          %p243 = pneg %p96
        $region22: #{tpu_custom_call.1} parent=19 // pred_check_branch
          %245 = sbr.rel (%p243) target = $region24
        $region23: #{tpu_custom_call.1} parent=19 // pred_region
          %s246 = sand.u32 %s19, 1
          %s247 = scalar_lea.sflag [#allocation9], %s246
          %s248 = sand.u32 %s86, 1
          %s249 = smul.addr %s248, 64
          %s250 = scalar_lea.vmem [#allocation8], %s249
          %p251 = scmp.eq.s32.totalorder %s26, 0
          %p252 = scmp.eq.s32.totalorder %s27, 0
          %p253 = pnand %p251, %p252
          %p254 = pneg %p253
          %s255 = scalar_select %p254, %s28, 0
          %s256 = smul.u32 16, %s255
          %258 = vsyncadd %s247, 0
          %s259 = smul.addr %s256, 4
          %s260 = scalar_lea.hbm %s1, %s259
          %s261 = sshll.u32 %s260, 4
          %s262 = int_to_ptr.hbm [resolvable:$true] %s261
          %s263 = sshll.u32 %s250, 4
          %s264 = int_to_ptr.vmem [resolvable:$true] %s263
          %269 = dma.hbm_to_vmem [thread:$0]  %s262, 1024, %s264, %s247, 64, 64, 4
        $region24: #{tpu_custom_call.1} parent=19 // pred_fallthru
          _
        // Predicated region
        $region25: #{tpu_custom_call.1} parent=19 // pred_check
          %p270 = pneg %p122
        $region26: #{tpu_custom_call.1} parent=19 // pred_check_branch
          %272 = sbr.rel (%p270) target = $region28
        $region27: #{tpu_custom_call.1} parent=19 // pred_region
          %s273 = sand.u32 %s19, 1
          %s274 = scalar_lea.sflag [#allocation9], %s273
          %s275 = sand.u32 %s112, 1
          %s276 = smul.addr %s275, 64
          %s277 = scalar_lea.vmem [#allocation10], %s276
          %279 = vsyncadd %s274, 0
          %s280 = smul.addr %s26, 16
          %s281 = smul.addr %s280, 4
          %s282 = scalar_lea.hbm %s2, %s281
          %s283 = sshll.u32 %s282, 4
          %s284 = int_to_ptr.hbm [resolvable:$true] %s283
          %s285 = sshll.u32 %s277, 4
          %s286 = int_to_ptr.vmem [resolvable:$true] %s285
          %291 = dma.hbm_to_vmem [thread:$0]  %s284, 1024, %s286, %s274, 64, 64, 4
        $region28: #{tpu_custom_call.1} parent=19 // pred_fallthru
          _
        // Predicated region
        $region29: #{tpu_custom_call.1} parent=19 // pred_check
          %p292 = pneg %p148
        $region30: #{tpu_custom_call.1} parent=19 // pred_check_branch
          %294 = sbr.rel (%p292) target = $region32
        $region31: #{tpu_custom_call.1} parent=19 // pred_region
          %p295 = scmp.lt.s32.totalorder %s26, 1
          %s296 = scalar_select %p295, %s26, 1
          %s297 = scalar_lea.vmem %s3, %s296
        $region32: #{tpu_custom_call.1} parent=19 // pred_fallthru
          _
        // Predicated region
        $region33: #{tpu_custom_call.1} parent=19 // pred_check
          %p298 = pneg %p174
        $region34: #{tpu_custom_call.1} parent=19 // pred_check_branch
          %300 = sbr.rel (%p298) target = $region36
        $region35: #{tpu_custom_call.1} parent=19 // pred_region
          %s301 = sand.u32 %s164, 1
          %s302 = scalar_lea.sflag [#allocation12], %s301
          %s303 = sand.u32 %s164, 1
          %s304 = scalar_lea.vmem [#allocation11], %s303
          %306 = vsyncadd %s302, 0
          %s307 = scalar_lea.hbm %s4, %s26
          %s309 = sshll.u32 %s307, 4
          %s310 = int_to_ptr.hbm [resolvable:$true] %s309
          %s311 = sshll.u32 %s304, 4
          %s312 = int_to_ptr.vmem [resolvable:$true] %s311
          %314 = dma.hbm_to_vmem [thread:$0]  %s310, 16, %s312, %s302
        $region36: #{tpu_custom_call.1} parent=19 // pred_fallthru
          _
      $region20: #{tpu_custom_call.1} parent=5 // pred_fallthru
        _
      %p315 = scmp.le.s32.totalorder 1, %s19
      %p316 = scmp.lt.s32.totalorder %s19, 3
      %p317 = pnand %p315, %p316
      %p318 = pneg %p317
      // Predicated region
      $region37: #{tpu_custom_call.1} parent=5 // pred_check
        _
      $region38: #{tpu_custom_call.1} parent=5 // pred_check_branch
        %320 = sbr.rel (%p317) target = $region40
      $region39: #{tpu_custom_call.1} parent=5 // pred_region
        %s321 = ssub.s32 %s19, 1
        // Predicated region
        $region41: #{tpu_custom_call.1} parent=39 // pred_check
          %p322 = pneg %p66
        $region42: #{tpu_custom_call.1} parent=39 // pred_check_branch
          %324 = sbr.rel (%p322) target = $region44
        $region43: #{tpu_custom_call.1} parent=39 // pred_region
          %326 = dma.done [#allocation6], 1024
        $region44: #{tpu_custom_call.1} parent=39 // pred_fallthru
          _
        %s327 = sand.u32 %s24, 1
        %s328 = scalar_lea.sflag [#allocation9], %s327
        %s329 = sand.u32 %s89, 1
        %s330 = smul.addr %s329, 64
        %s331 = scalar_lea.vmem [#allocation8], %s330
        // Predicated region
        $region45: #{tpu_custom_call.1} parent=39 // pred_check
          %p332 = pneg %p102
        $region46: #{tpu_custom_call.1} parent=39 // pred_check_branch
          %334 = sbr.rel (%p332) target = $region48
        $region47: #{tpu_custom_call.1} parent=39 // pred_region
          %336 = dma.done %s328, 1024
        $region48: #{tpu_custom_call.1} parent=39 // pred_fallthru
          _
        %s337 = sand.u32 %s24, 1
        %s338 = scalar_lea.sflag [#allocation9], %s337
        %s339 = sand.u32 %s115, 1
        %s340 = smul.addr %s339, 64
        %s341 = scalar_lea.vmem [#allocation10], %s340
        // Predicated region
        $region49: #{tpu_custom_call.1} parent=39 // pred_check
          %p342 = pneg %p128
        $region50: #{tpu_custom_call.1} parent=39 // pred_check_branch
          %344 = sbr.rel (%p342) target = $region52
        $region51: #{tpu_custom_call.1} parent=39 // pred_region
          %346 = dma.done %s338, 1024
        $region52: #{tpu_custom_call.1} parent=39 // pred_fallthru
          _
        %s347 = sand.u32 %s167, 1
        %s348 = scalar_lea.sflag [#allocation12], %s347
        %s349 = sand.u32 %s167, 1
        %s350 = scalar_lea.vmem [#allocation11], %s349
        // Predicated region
        $region53: #{tpu_custom_call.1} parent=39 // pred_check
          %p351 = pneg %p180
        $region54: #{tpu_custom_call.1} parent=39 // pred_check_branch
          %353 = sbr.rel (%p351) target = $region56
        $region55: #{tpu_custom_call.1} parent=39 // pred_region
          %355 = dma.done %s348, 16
        $region56: #{tpu_custom_call.1} parent=39 // pred_fallthru
          _
        %p356 = pneg %p66
        %p357 = pneg %p63
        %s358 = sand.u32 %s24, 1
        %s359 = scalar_lea.sflag [#allocation9], %s358
        %s360 = sand.u32 %s89, 1
        %s361 = smul.addr %s360, 64
        %s362 = scalar_lea.vmem [#allocation8], %s361
        %p363 = pneg %p102
        %p364 = pneg %p99
        %s365 = sand.u32 %s24, 1
        %s366 = scalar_lea.sflag [#allocation9], %s365
        %s367 = sand.u32 %s115, 1
        %s368 = smul.addr %s367, 64
        %s369 = scalar_lea.vmem [#allocation10], %s368
        %p370 = pneg %p128
        %p371 = pneg %p125
        %p372 = scmp.lt.s32.totalorder %s29, 1
        %s373 = scalar_select %p372, %s29, 1
        %s374 = scalar_lea.vmem %s3, %s373
        %p375 = pneg %p154
        %p376 = pneg %p151
        %s377 = sand.u32 %s167, 1
        %s378 = scalar_lea.sflag [#allocation12], %s377
        %s379 = sand.u32 %s167, 1
        %s380 = scalar_lea.vmem [#allocation11], %s379
        %p381 = pneg %p180
        %p382 = pneg %p177
        %p383 = pneg %p206
        %p384 = pneg %p203
        %s385 = smul.u32 16, %s30
        %p386 = scmp.eq.s32.totalorder %s29, 0
        %p387 = scmp.eq.s32.totalorder %s30, 0
        %p388 = pnand %p386, %p387
        %p389 = pneg %p388
        %s390 = scalar_select %p389, %s31, 0
        %s391 = smul.u32 16, %s390
        %p392 = scmp.lt.s32.totalorder %s29, 1
        %s393 = scalar_select %p392, %s29, 1
        %s394 = scalar_lea.vmem %s3, %s393
        %s395 = smul.u32 16, %s30
        %s396 = smul.u32 %s31, 128
        %p397 = scmp.eq.s32.totalorder %s30, 0
        %p398 = scmp.eq.s32.totalorder %s29, 0
        %p399 = pnand %p397, %p398
        %p400 = pneg %p399
        // Predicated region
        $region57: #{tpu_custom_call.1} parent=39 // pred_check
          _
        $region58: #{tpu_custom_call.1} parent=39 // pred_check_branch
          %402 = sbr.rel (%p399) target = $region60
        $region59: #{tpu_custom_call.1} parent=39 // pred_region
          %v403 = vld [vmem:[%s331] sm:$0xf]
          %v404 = vld [vmem:[%s331 + $0x4] sm:$0xf]
          %v405 = vld [vmem:[%s331 + $0x8] sm:$0xf]
          %v406 = vld [vmem:[%s331 + $0xc] sm:$0xf]
          %v407 = vld [vmem:[%s331 + $0x10] sm:$0xf]
          %v408 = vld [vmem:[%s331 + $0x14] sm:$0xf]
          %v409 = vld [vmem:[%s331 + $0x18] sm:$0xf]
          %v410 = vld [vmem:[%s331 + $0x1c] sm:$0xf]
          %v411 = vld [vmem:[%s331 + $0x20] sm:$0xf]
          %v412 = vld [vmem:[%s331 + $0x24] sm:$0xf]
          %v413 = vld [vmem:[%s331 + $0x28] sm:$0xf]
          %v414 = vld [vmem:[%s331 + $0x2c] sm:$0xf]
          %v415 = vld [vmem:[%s331 + $0x30] sm:$0xf]
          %v416 = vld [vmem:[%s331 + $0x34] sm:$0xf]
          %v417 = vld [vmem:[%s331 + $0x38] sm:$0xf]
          %v418 = vld [vmem:[%s331 + $0x3c] sm:$0xf]
          %v419 = vld [vmem:[%s341] sm:$0xf]
          %v420 = vld [vmem:[%s341 + $0x4] sm:$0xf]
          %v421 = vld [vmem:[%s341 + $0x8] sm:$0xf]
          %v422 = vld [vmem:[%s341 + $0xc] sm:$0xf]
          %v423 = vld [vmem:[%s341 + $0x10] sm:$0xf]
          %v424 = vld [vmem:[%s341 + $0x14] sm:$0xf]
          %v425 = vld [vmem:[%s341 + $0x18] sm:$0xf]
          %v426 = vld [vmem:[%s341 + $0x1c] sm:$0xf]
          %v427 = vld [vmem:[%s341 + $0x20] sm:$0xf]
          %v428 = vld [vmem:[%s341 + $0x24] sm:$0xf]
          %v429 = vld [vmem:[%s341 + $0x28] sm:$0xf]
          %v430 = vld [vmem:[%s341 + $0x2c] sm:$0xf]
          %v431 = vld [vmem:[%s341 + $0x30] sm:$0xf]
          %v432 = vld [vmem:[%s341 + $0x34] sm:$0xf]
          %v433 = vld [vmem:[%s341 + $0x38] sm:$0xf]
          %v434 = vld [vmem:[%s341 + $0x3c] sm:$0xf]
          %v451 = vunpack.c.l.b16 %v403
          %v452 = vunpack.c.l.b16 %v404
          %v453 = vunpack.c.l.b16 %v405
          %v454 = vunpack.c.l.b16 %v406
          %v455 = vunpack.c.l.b16 %v407
          %v456 = vunpack.c.l.b16 %v408
          %v457 = vunpack.c.l.b16 %v409
          %v458 = vunpack.c.l.b16 %v410
          %v459 = vunpack.c.l.b16 %v411
          %v460 = vunpack.c.l.b16 %v412
          %v461 = vunpack.c.l.b16 %v413
          %v462 = vunpack.c.l.b16 %v414
          %v463 = vunpack.c.l.b16 %v415
          %v464 = vunpack.c.l.b16 %v416
          %v465 = vunpack.c.l.b16 %v417
          %v466 = vunpack.c.l.b16 %v418
          %v467 = vpack.c.b16 %v452, %v451
          %v468 = vpack.c.b16 %v454, %v453
          %v469 = vpack.c.b16 %v456, %v455
          %v470 = vpack.c.b16 %v458, %v457
          %v471 = vpack.c.b16 %v460, %v459
          %v472 = vpack.c.b16 %v462, %v461
          %v473 = vpack.c.b16 %v464, %v463
          %v474 = vpack.c.b16 %v466, %v465
          %v499 = vunpack.c.l.b16 %v419
          %v500 = vunpack.c.l.b16 %v420
          %v501 = vunpack.c.l.b16 %v421
          %v502 = vunpack.c.l.b16 %v422
          %v503 = vunpack.c.l.b16 %v423
          %v504 = vunpack.c.l.b16 %v424
          %v505 = vunpack.c.l.b16 %v425
          %v506 = vunpack.c.l.b16 %v426
          %v507 = vunpack.c.l.b16 %v427
          %v508 = vunpack.c.l.b16 %v428
          %v509 = vunpack.c.l.b16 %v429
          %v510 = vunpack.c.l.b16 %v430
          %v511 = vunpack.c.l.b16 %v431
          %v512 = vunpack.c.l.b16 %v432
          %v513 = vunpack.c.l.b16 %v433
          %v514 = vunpack.c.l.b16 %v434
          %v515 = vpack.c.b16 %v500, %v499
          %v516 = vpack.c.b16 %v502, %v501
          %v517 = vpack.c.b16 %v504, %v503
          %v518 = vpack.c.b16 %v506, %v505
          %v519 = vpack.c.b16 %v508, %v507
          %v520 = vpack.c.b16 %v510, %v509
          %v521 = vpack.c.b16 %v512, %v511
          %v522 = vpack.c.b16 %v514, %v513
          %531 = vmatpush.bf16.msra.mxu0 %v522
          %532 = vmatpush.bf16.msra.mxu0 %v521
          %533 = vmatpush.bf16.msra.mxu0 %v520
          %534 = vmatpush.bf16.msra.mxu0 %v519
          %535 = vmatpush.bf16.msra.mxu0 %v518
          %536 = vmatpush.bf16.msra.mxu0 %v517
          %537 = vmatpush.bf16.msra.mxu0 %v516
          %538 = vmatpush.bf16.msra.mxu0 %v515
          %539 = vmatmul.bf16.gmra.mxu0 %v467
          %v540 = vpop.f32.mrf.mxu0
          %v541 = vadd.f32 0.0, %v540
          %v542 = vpop.f32.mrf.mxu0
          %v543 = vadd.f32 0.0, %v542
          %544 = vmatmul.bf16.gmra.mxu0 %v468
          %v545 = vpop.f32.mrf.mxu0
          %v546 = vadd.f32 0.0, %v545
          %v547 = vpop.f32.mrf.mxu0
          %v548 = vadd.f32 0.0, %v547
          %549 = vmatmul.bf16.gmra.mxu0 %v469
          %v550 = vpop.f32.mrf.mxu0
          %v551 = vadd.f32 0.0, %v550
          %v552 = vpop.f32.mrf.mxu0
          %v553 = vadd.f32 0.0, %v552
          %554 = vmatmul.bf16.gmra.mxu0 %v470
          %v555 = vpop.f32.mrf.mxu0
          %v556 = vadd.f32 0.0, %v555
          %v557 = vpop.f32.mrf.mxu0
          %v558 = vadd.f32 0.0, %v557
          %559 = vmatmul.bf16.gmra.mxu0 %v471
          %v560 = vpop.f32.mrf.mxu0
          %v561 = vadd.f32 0.0, %v560
          %v562 = vpop.f32.mrf.mxu0
          %v563 = vadd.f32 0.0, %v562
          %564 = vmatmul.bf16.gmra.mxu0 %v472
          %v565 = vpop.f32.mrf.mxu0
          %v566 = vadd.f32 0.0, %v565
          %v567 = vpop.f32.mrf.mxu0
          %v568 = vadd.f32 0.0, %v567
          %569 = vmatmul.bf16.gmra.mxu0 %v473
          %v570 = vpop.f32.mrf.mxu0
          %v571 = vadd.f32 0.0, %v570
          %v572 = vpop.f32.mrf.mxu0
          %v573 = vadd.f32 0.0, %v572
          %574 = vmatmul.bf16.gmra.mxu0 %v474
          %v575 = vpop.f32.mrf.mxu0
          %v576 = vadd.f32 0.0, %v575
          %v577 = vpop.f32.mrf.mxu0
          %v578 = vadd.f32 0.0, %v577
          %579 = vdwg.mxu0
          %v580 = vpack.c.bf16 %v541, %v541
          %v581 = vpack.c.bf16 %v543, %v543
          %v582 = vpack.c.bf16 %v546, %v546
          %v583 = vpack.c.bf16 %v548, %v548
          %v584 = vpack.c.bf16 %v551, %v551
          %v585 = vpack.c.bf16 %v553, %v553
          %v586 = vpack.c.bf16 %v556, %v556
          %v587 = vpack.c.bf16 %v558, %v558
          %v588 = vpack.c.bf16 %v561, %v561
          %v589 = vpack.c.bf16 %v563, %v563
          %v590 = vpack.c.bf16 %v566, %v566
          %v591 = vpack.c.bf16 %v568, %v568
          %v592 = vpack.c.bf16 %v571, %v571
          %v593 = vpack.c.bf16 %v573, %v573
          %v594 = vpack.c.bf16 %v576, %v576
          %v595 = vpack.c.bf16 %v578, %v578
          %s596 = sshra.s32 %s396, 3
          %s597 = sand.u32 %s396, 7
          %s598 = smul.addr %s596, 4
          %s599 = scalar_lea.vmem [#allocation2], %s598
          %600 = vst [vmem:[%s599] sm:$0xf] %v580
          %601 = vst [vmem:[%s599 + $0x4] sm:$0xf] %v581
          %602 = vst [vmem:[%s599 + $0x8] sm:$0xf] %v582
          %603 = vst [vmem:[%s599 + $0xc] sm:$0xf] %v583
          %604 = vst [vmem:[%s599 + $0x10] sm:$0xf] %v584
          %605 = vst [vmem:[%s599 + $0x14] sm:$0xf] %v585
          %606 = vst [vmem:[%s599 + $0x18] sm:$0xf] %v586
          %607 = vst [vmem:[%s599 + $0x1c] sm:$0xf] %v587
          %608 = vst [vmem:[%s599 + $0x20] sm:$0xf] %v588
          %609 = vst [vmem:[%s599 + $0x24] sm:$0xf] %v589
          %610 = vst [vmem:[%s599 + $0x28] sm:$0xf] %v590
          %611 = vst [vmem:[%s599 + $0x2c] sm:$0xf] %v591
          %612 = vst [vmem:[%s599 + $0x30] sm:$0xf] %v592
          %613 = vst [vmem:[%s599 + $0x34] sm:$0xf] %v593
          %614 = vst [vmem:[%s599 + $0x38] sm:$0xf] %v594
          %615 = vst [vmem:[%s599 + $0x3c] sm:$0xf] %v595
        $region60: #{tpu_custom_call.1} parent=39 // pred_fallthru
          _
        %p616 = scmp.gt.s32.totalorder %s29, 0
        %p617 = pnand %p397, %p616
        %p618 = pneg %p617
        // Predicated region
        $region61: #{tpu_custom_call.1} parent=39 // pred_check
          _
        $region62: #{tpu_custom_call.1} parent=39 // pred_check_branch
          %620 = sbr.rel (%p617) target = $region64
        $region63: #{tpu_custom_call.1} parent=39 // pred_region
          %s621 = sshra.s32 %s396, 3
          %s622 = sand.u32 %s396, 7
          %s623 = smul.addr %s621, 4
          %s624 = scalar_lea.vmem [#allocation3], %s623
          %v625 = vld [vmem:[%s624] sm:$0xf]
          %v626 = vld [vmem:[%s624 + $0x4] sm:$0xf]
          %v627 = vld [vmem:[%s624 + $0x8] sm:$0xf]
          %v628 = vld [vmem:[%s624 + $0xc] sm:$0xf]
          %v629 = vld [vmem:[%s624 + $0x10] sm:$0xf]
          %v630 = vld [vmem:[%s624 + $0x14] sm:$0xf]
          %v631 = vld [vmem:[%s624 + $0x18] sm:$0xf]
          %v632 = vld [vmem:[%s624 + $0x1c] sm:$0xf]
          %v633 = vld [vmem:[%s624 + $0x20] sm:$0xf]
          %v634 = vld [vmem:[%s624 + $0x24] sm:$0xf]
          %v635 = vld [vmem:[%s624 + $0x28] sm:$0xf]
          %v636 = vld [vmem:[%s624 + $0x2c] sm:$0xf]
          %v637 = vld [vmem:[%s624 + $0x30] sm:$0xf]
          %v638 = vld [vmem:[%s624 + $0x34] sm:$0xf]
          %v639 = vld [vmem:[%s624 + $0x38] sm:$0xf]
          %v640 = vld [vmem:[%s624 + $0x3c] sm:$0xf]
          %v641 = vld [vmem:[%s341] sm:$0xf]
          %v642 = vld [vmem:[%s341 + $0x4] sm:$0xf]
          %v643 = vld [vmem:[%s341 + $0x8] sm:$0xf]
          %v644 = vld [vmem:[%s341 + $0xc] sm:$0xf]
          %v645 = vld [vmem:[%s341 + $0x10] sm:$0xf]
          %v646 = vld [vmem:[%s341 + $0x14] sm:$0xf]
          %v647 = vld [vmem:[%s341 + $0x18] sm:$0xf]
          %v648 = vld [vmem:[%s341 + $0x1c] sm:$0xf]
          %v649 = vld [vmem:[%s341 + $0x20] sm:$0xf]
          %v650 = vld [vmem:[%s341 + $0x24] sm:$0xf]
          %v651 = vld [vmem:[%s341 + $0x28] sm:$0xf]
          %v652 = vld [vmem:[%s341 + $0x2c] sm:$0xf]
          %v653 = vld [vmem:[%s341 + $0x30] sm:$0xf]
          %v654 = vld [vmem:[%s341 + $0x34] sm:$0xf]
          %v655 = vld [vmem:[%s341 + $0x38] sm:$0xf]
          %v656 = vld [vmem:[%s341 + $0x3c] sm:$0xf]
          %v673 = vunpack.c.l.b16 %v625
          %v674 = vunpack.c.l.b16 %v626
          %v675 = vunpack.c.l.b16 %v627
          %v676 = vunpack.c.l.b16 %v628
          %v677 = vunpack.c.l.b16 %v629
          %v678 = vunpack.c.l.b16 %v630
          %v679 = vunpack.c.l.b16 %v631
          %v680 = vunpack.c.l.b16 %v632
          %v681 = vunpack.c.l.b16 %v633
          %v682 = vunpack.c.l.b16 %v634
          %v683 = vunpack.c.l.b16 %v635
          %v684 = vunpack.c.l.b16 %v636
          %v685 = vunpack.c.l.b16 %v637
          %v686 = vunpack.c.l.b16 %v638
          %v687 = vunpack.c.l.b16 %v639
          %v688 = vunpack.c.l.b16 %v640
          %v689 = vpack.c.b16 %v674, %v673
          %v690 = vpack.c.b16 %v676, %v675
          %v691 = vpack.c.b16 %v678, %v677
          %v692 = vpack.c.b16 %v680, %v679
          %v693 = vpack.c.b16 %v682, %v681
          %v694 = vpack.c.b16 %v684, %v683
          %v695 = vpack.c.b16 %v686, %v685
          %v696 = vpack.c.b16 %v688, %v687
          %v721 = vunpack.c.l.b16 %v641
          %v722 = vunpack.c.l.b16 %v642
          %v723 = vunpack.c.l.b16 %v643
          %v724 = vunpack.c.l.b16 %v644
          %v725 = vunpack.c.l.b16 %v645
          %v726 = vunpack.c.l.b16 %v646
          %v727 = vunpack.c.l.b16 %v647
          %v728 = vunpack.c.l.b16 %v648
          %v729 = vunpack.c.l.b16 %v649
          %v730 = vunpack.c.l.b16 %v650
          %v731 = vunpack.c.l.b16 %v651
          %v732 = vunpack.c.l.b16 %v652
          %v733 = vunpack.c.l.b16 %v653
          %v734 = vunpack.c.l.b16 %v654
          %v735 = vunpack.c.l.b16 %v655
          %v736 = vunpack.c.l.b16 %v656
          %v737 = vpack.c.b16 %v722, %v721
          %v738 = vpack.c.b16 %v724, %v723
          %v739 = vpack.c.b16 %v726, %v725
          %v740 = vpack.c.b16 %v728, %v727
          %v741 = vpack.c.b16 %v730, %v729
          %v742 = vpack.c.b16 %v732, %v731
          %v743 = vpack.c.b16 %v734, %v733
          %v744 = vpack.c.b16 %v736, %v735
          %753 = vmatpush.bf16.msra.mxu0 %v744
          %754 = vmatpush.bf16.msra.mxu0 %v743
          %755 = vmatpush.bf16.msra.mxu0 %v742
          %756 = vmatpush.bf16.msra.mxu0 %v741
          %757 = vmatpush.bf16.msra.mxu0 %v740
          %758 = vmatpush.bf16.msra.mxu0 %v739
          %759 = vmatpush.bf16.msra.mxu0 %v738
          %760 = vmatpush.bf16.msra.mxu0 %v737
          %761 = vmatmul.bf16.gmra.mxu0 %v689
          %v762 = vpop.f32.mrf.mxu0
          %v763 = vadd.f32 0.0, %v762
          %v764 = vpop.f32.mrf.mxu0
          %v765 = vadd.f32 0.0, %v764
          %766 = vmatmul.bf16.gmra.mxu0 %v690
          %v767 = vpop.f32.mrf.mxu0
          %v768 = vadd.f32 0.0, %v767
          %v769 = vpop.f32.mrf.mxu0
          %v770 = vadd.f32 0.0, %v769
          %771 = vmatmul.bf16.gmra.mxu0 %v691
          %v772 = vpop.f32.mrf.mxu0
          %v773 = vadd.f32 0.0, %v772
          %v774 = vpop.f32.mrf.mxu0
          %v775 = vadd.f32 0.0, %v774
          %776 = vmatmul.bf16.gmra.mxu0 %v692
          %v777 = vpop.f32.mrf.mxu0
          %v778 = vadd.f32 0.0, %v777
          %v779 = vpop.f32.mrf.mxu0
          %v780 = vadd.f32 0.0, %v779
          %781 = vmatmul.bf16.gmra.mxu0 %v693
          %v782 = vpop.f32.mrf.mxu0
          %v783 = vadd.f32 0.0, %v782
          %v784 = vpop.f32.mrf.mxu0
          %v785 = vadd.f32 0.0, %v784
          %786 = vmatmul.bf16.gmra.mxu0 %v694
          %v787 = vpop.f32.mrf.mxu0
          %v788 = vadd.f32 0.0, %v787
          %v789 = vpop.f32.mrf.mxu0
          %v790 = vadd.f32 0.0, %v789
          %791 = vmatmul.bf16.gmra.mxu0 %v695
          %v792 = vpop.f32.mrf.mxu0
          %v793 = vadd.f32 0.0, %v792
          %v794 = vpop.f32.mrf.mxu0
          %v795 = vadd.f32 0.0, %v794
          %796 = vmatmul.bf16.gmra.mxu0 %v696
          %v797 = vpop.f32.mrf.mxu0
          %v798 = vadd.f32 0.0, %v797
          %v799 = vpop.f32.mrf.mxu0
          %v800 = vadd.f32 0.0, %v799
          %801 = vdwg.mxu0
          %v802 = vpack.c.bf16 %v763, %v763
          %v803 = vpack.c.bf16 %v765, %v765
          %v804 = vpack.c.bf16 %v768, %v768
          %v805 = vpack.c.bf16 %v770, %v770
          %v806 = vpack.c.bf16 %v773, %v773
          %v807 = vpack.c.bf16 %v775, %v775
          %v808 = vpack.c.bf16 %v778, %v778
          %v809 = vpack.c.bf16 %v780, %v780
          %v810 = vpack.c.bf16 %v783, %v783
          %v811 = vpack.c.bf16 %v785, %v785
          %v812 = vpack.c.bf16 %v788, %v788
          %v813 = vpack.c.bf16 %v790, %v790
          %v814 = vpack.c.bf16 %v793, %v793
          %v815 = vpack.c.bf16 %v795, %v795
          %v816 = vpack.c.bf16 %v798, %v798
          %v817 = vpack.c.bf16 %v800, %v800
          %s818 = smul.addr %s621, 4
          %s819 = scalar_lea.vmem [#allocation2], %s818
          %820 = vst [vmem:[%s819] sm:$0xf] %v802
          %821 = vst [vmem:[%s819 + $0x4] sm:$0xf] %v803
          %822 = vst [vmem:[%s819 + $0x8] sm:$0xf] %v804
          %823 = vst [vmem:[%s819 + $0xc] sm:$0xf] %v805
          %824 = vst [vmem:[%s819 + $0x10] sm:$0xf] %v806
          %825 = vst [vmem:[%s819 + $0x14] sm:$0xf] %v807
          %826 = vst [vmem:[%s819 + $0x18] sm:$0xf] %v808
          %827 = vst [vmem:[%s819 + $0x1c] sm:$0xf] %v809
          %828 = vst [vmem:[%s819 + $0x20] sm:$0xf] %v810
          %829 = vst [vmem:[%s819 + $0x24] sm:$0xf] %v811
          %830 = vst [vmem:[%s819 + $0x28] sm:$0xf] %v812
          %831 = vst [vmem:[%s819 + $0x2c] sm:$0xf] %v813
          %832 = vst [vmem:[%s819 + $0x30] sm:$0xf] %v814
          %833 = vst [vmem:[%s819 + $0x34] sm:$0xf] %v815
          %834 = vst [vmem:[%s819 + $0x38] sm:$0xf] %v816
          %835 = vst [vmem:[%s819 + $0x3c] sm:$0xf] %v817
        $region64: #{tpu_custom_call.1} parent=39 // pred_fallthru
          _
        %p836 = scmp.eq.s32.totalorder %s31, 0
        // Predicated region
        $region65: #{tpu_custom_call.1} parent=39 // pred_check
          %p837 = pneg %p836
        $region66: #{tpu_custom_call.1} parent=39 // pred_check_branch
          %839 = sbr.rel (%p837) target = $region68
        $region67: #{tpu_custom_call.1} parent=39 // pred_region
          %840 = vst [vmem:[#allocation4] sm:$0xff] 0.0
          %841 = vst [vmem:[#allocation4 + $0x8] sm:$0xff] 0.0
          %842 = vst [vmem:[#allocation4 + $0x10] sm:$0xff] 0.0
          %843 = vst [vmem:[#allocation4 + $0x18] sm:$0xff] 0.0
          %844 = vst [vmem:[#allocation4 + $0x20] sm:$0xff] 0.0
          %845 = vst [vmem:[#allocation4 + $0x28] sm:$0xff] 0.0
          %846 = vst [vmem:[#allocation4 + $0x30] sm:$0xff] 0.0
          %847 = vst [vmem:[#allocation4 + $0x38] sm:$0xff] 0.0
          %848 = vst [vmem:[#allocation4 + $0x40] sm:$0xff] 0.0
          %849 = vst [vmem:[#allocation4 + $0x48] sm:$0xff] 0.0
          %850 = vst [vmem:[#allocation4 + $0x50] sm:$0xff] 0.0
          %851 = vst [vmem:[#allocation4 + $0x58] sm:$0xff] 0.0
          %852 = vst [vmem:[#allocation4 + $0x60] sm:$0xff] 0.0
          %853 = vst [vmem:[#allocation4 + $0x68] sm:$0xff] 0.0
          %854 = vst [vmem:[#allocation4 + $0x70] sm:$0xff] 0.0
          %855 = vst [vmem:[#allocation4 + $0x78] sm:$0xff] 0.0
        $region68: #{tpu_custom_call.1} parent=39 // pred_fallthru
          _
        %v856 = vld [vmem:[#allocation4] sm:$0xff]
        %v857 = vld [vmem:[#allocation4 + $0x8] sm:$0xff]
        %v858 = vld [vmem:[#allocation4 + $0x10] sm:$0xff]
        %v859 = vld [vmem:[#allocation4 + $0x18] sm:$0xff]
        %v860 = vld [vmem:[#allocation4 + $0x20] sm:$0xff]
        %v861 = vld [vmem:[#allocation4 + $0x28] sm:$0xff]
        %v862 = vld [vmem:[#allocation4 + $0x30] sm:$0xff]
        %v863 = vld [vmem:[#allocation4 + $0x38] sm:$0xff]
        %v864 = vld [vmem:[#allocation4 + $0x40] sm:$0xff]
        %v865 = vld [vmem:[#allocation4 + $0x48] sm:$0xff]
        %v866 = vld [vmem:[#allocation4 + $0x50] sm:$0xff]
        %v867 = vld [vmem:[#allocation4 + $0x58] sm:$0xff]
        %v868 = vld [vmem:[#allocation4 + $0x60] sm:$0xff]
        %v869 = vld [vmem:[#allocation4 + $0x68] sm:$0xff]
        %v870 = vld [vmem:[#allocation4 + $0x70] sm:$0xff]
        %v871 = vld [vmem:[#allocation4 + $0x78] sm:$0xff]
        %v872 = vld [vmem:[#allocation5] sm:$0xf]
        %v873 = vld [vmem:[#allocation5 + $0x4] sm:$0xf]
        %v874 = vld [vmem:[#allocation5 + $0x8] sm:$0xf]
        %v875 = vld [vmem:[#allocation5 + $0xc] sm:$0xf]
        %v876 = vld [vmem:[#allocation5 + $0x10] sm:$0xf]
        %v877 = vld [vmem:[#allocation5 + $0x14] sm:$0xf]
        %v878 = vld [vmem:[#allocation5 + $0x18] sm:$0xf]
        %v879 = vld [vmem:[#allocation5 + $0x1c] sm:$0xf]
        %v880 = vld [vmem:[#allocation5 + $0x20] sm:$0xf]
        %v881 = vld [vmem:[#allocation5 + $0x24] sm:$0xf]
        %v882 = vld [vmem:[#allocation5 + $0x28] sm:$0xf]
        %v883 = vld [vmem:[#allocation5 + $0x2c] sm:$0xf]
        %v884 = vld [vmem:[#allocation5 + $0x30] sm:$0xf]
        %v885 = vld [vmem:[#allocation5 + $0x34] sm:$0xf]
        %v886 = vld [vmem:[#allocation5 + $0x38] sm:$0xf]
        %v887 = vld [vmem:[#allocation5 + $0x3c] sm:$0xf]
        %s888 = sshra.s32 %s396, 3
        %s889 = sand.u32 %s396, 7
        %s890 = smul.addr %s888, 4
        %s891 = scalar_lea.vmem [#allocation2], %s890
        %v892 = vld [vmem:[%s891] sm:$0xf]
        %v893 = vld [vmem:[%s891 + $0x4] sm:$0xf]
        %v894 = vld [vmem:[%s891 + $0x8] sm:$0xf]
        %v895 = vld [vmem:[%s891 + $0xc] sm:$0xf]
        %v896 = vld [vmem:[%s891 + $0x10] sm:$0xf]
        %v897 = vld [vmem:[%s891 + $0x14] sm:$0xf]
        %v898 = vld [vmem:[%s891 + $0x18] sm:$0xf]
        %v899 = vld [vmem:[%s891 + $0x1c] sm:$0xf]
        %v900 = vld [vmem:[%s891 + $0x20] sm:$0xf]
        %v901 = vld [vmem:[%s891 + $0x24] sm:$0xf]
        %v902 = vld [vmem:[%s891 + $0x28] sm:$0xf]
        %v903 = vld [vmem:[%s891 + $0x2c] sm:$0xf]
        %v904 = vld [vmem:[%s891 + $0x30] sm:$0xf]
        %v905 = vld [vmem:[%s891 + $0x34] sm:$0xf]
        %v906 = vld [vmem:[%s891 + $0x38] sm:$0xf]
        %v907 = vld [vmem:[%s891 + $0x3c] sm:$0xf]
        %v924 = vunpack.c.l.b16 %v872
        %v925 = vunpack.c.l.b16 %v873
        %v926 = vunpack.c.l.b16 %v874
        %v927 = vunpack.c.l.b16 %v875
        %v928 = vunpack.c.l.b16 %v876
        %v929 = vunpack.c.l.b16 %v877
        %v930 = vunpack.c.l.b16 %v878
        %v931 = vunpack.c.l.b16 %v879
        %v932 = vunpack.c.l.b16 %v880
        %v933 = vunpack.c.l.b16 %v881
        %v934 = vunpack.c.l.b16 %v882
        %v935 = vunpack.c.l.b16 %v883
        %v936 = vunpack.c.l.b16 %v884
        %v937 = vunpack.c.l.b16 %v885
        %v938 = vunpack.c.l.b16 %v886
        %v939 = vunpack.c.l.b16 %v887
        %v940 = vpack.c.b16 %v925, %v924
        %v941 = vpack.c.b16 %v927, %v926
        %v942 = vpack.c.b16 %v929, %v928
        %v943 = vpack.c.b16 %v931, %v930
        %v944 = vpack.c.b16 %v933, %v932
        %v945 = vpack.c.b16 %v935, %v934
        %v946 = vpack.c.b16 %v937, %v936
        %v947 = vpack.c.b16 %v939, %v938
        %v972 = vunpack.c.l.b16 %v892
        %v973 = vunpack.c.l.b16 %v893
        %v974 = vunpack.c.l.b16 %v894
        %v975 = vunpack.c.l.b16 %v895
        %v976 = vunpack.c.l.b16 %v896
        %v977 = vunpack.c.l.b16 %v897
        %v978 = vunpack.c.l.b16 %v898
        %v979 = vunpack.c.l.b16 %v899
        %v980 = vunpack.c.l.b16 %v900
        %v981 = vunpack.c.l.b16 %v901
        %v982 = vunpack.c.l.b16 %v902
        %v983 = vunpack.c.l.b16 %v903
        %v984 = vunpack.c.l.b16 %v904
        %v985 = vunpack.c.l.b16 %v905
        %v986 = vunpack.c.l.b16 %v906
        %v987 = vunpack.c.l.b16 %v907
        %v988 = vpack.c.b16 %v973, %v972
        %v989 = vpack.c.b16 %v975, %v974
        %v990 = vpack.c.b16 %v977, %v976
        %v991 = vpack.c.b16 %v979, %v978
        %v992 = vpack.c.b16 %v981, %v980
        %v993 = vpack.c.b16 %v983, %v982
        %v994 = vpack.c.b16 %v985, %v984
        %v995 = vpack.c.b16 %v987, %v986
        %1004 = vmatpush.bf16.msra.mxu0 %v995
        %1005 = vmatpush.bf16.msra.mxu0 %v994
        %1006 = vmatpush.bf16.msra.mxu0 %v993
        %1007 = vmatpush.bf16.msra.mxu0 %v992
        %1008 = vmatpush.bf16.msra.mxu0 %v991
        %1009 = vmatpush.bf16.msra.mxu0 %v990
        %1010 = vmatpush.bf16.msra.mxu0 %v989
        %1011 = vmatpush.bf16.msra.mxu0 %v988
        %1012 = vmatmul.bf16.gmra.mxu0 %v940
        %v1013 = vpop.f32.mrf.mxu0
        %v1014 = vadd.f32 0.0, %v1013
        %v1015 = vpop.f32.mrf.mxu0
        %v1016 = vadd.f32 0.0, %v1015
        %1017 = vmatmul.bf16.gmra.mxu0 %v941
        %v1018 = vpop.f32.mrf.mxu0
        %v1019 = vadd.f32 0.0, %v1018
        %v1020 = vpop.f32.mrf.mxu0
        %v1021 = vadd.f32 0.0, %v1020
        %1022 = vmatmul.bf16.gmra.mxu0 %v942
        %v1023 = vpop.f32.mrf.mxu0
        %v1024 = vadd.f32 0.0, %v1023
        %v1025 = vpop.f32.mrf.mxu0
        %v1026 = vadd.f32 0.0, %v1025
        %1027 = vmatmul.bf16.gmra.mxu0 %v943
        %v1028 = vpop.f32.mrf.mxu0
        %v1029 = vadd.f32 0.0, %v1028
        %v1030 = vpop.f32.mrf.mxu0
        %v1031 = vadd.f32 0.0, %v1030
        %1032 = vmatmul.bf16.gmra.mxu0 %v944
        %v1033 = vpop.f32.mrf.mxu0
        %v1034 = vadd.f32 0.0, %v1033
        %v1035 = vpop.f32.mrf.mxu0
        %v1036 = vadd.f32 0.0, %v1035
        %1037 = vmatmul.bf16.gmra.mxu0 %v945
        %v1038 = vpop.f32.mrf.mxu0
        %v1039 = vadd.f32 0.0, %v1038
        %v1040 = vpop.f32.mrf.mxu0
        %v1041 = vadd.f32 0.0, %v1040
        %1042 = vmatmul.bf16.gmra.mxu0 %v946
        %v1043 = vpop.f32.mrf.mxu0
        %v1044 = vadd.f32 0.0, %v1043
        %v1045 = vpop.f32.mrf.mxu0
        %v1046 = vadd.f32 0.0, %v1045
        %1047 = vmatmul.bf16.gmra.mxu0 %v947
        %v1048 = vpop.f32.mrf.mxu0
        %v1049 = vadd.f32 0.0, %v1048
        %v1050 = vpop.f32.mrf.mxu0
        %v1051 = vadd.f32 0.0, %v1050
        %1052 = vdwg.mxu0
        %v1053 = vadd.f32 %v856, %v1014
        %v1054 = vadd.f32 %v857, %v1016
        %v1055 = vadd.f32 %v858, %v1019
        %v1056 = vadd.f32 %v859, %v1021
        %v1057 = vadd.f32 %v860, %v1024
        %v1058 = vadd.f32 %v861, %v1026
        %v1059 = vadd.f32 %v862, %v1029
        %v1060 = vadd.f32 %v863, %v1031
        %v1061 = vadd.f32 %v864, %v1034
        %v1062 = vadd.f32 %v865, %v1036
        %v1063 = vadd.f32 %v866, %v1039
        %v1064 = vadd.f32 %v867, %v1041
        %v1065 = vadd.f32 %v868, %v1044
        %v1066 = vadd.f32 %v869, %v1046
        %v1067 = vadd.f32 %v870, %v1049
        %v1068 = vadd.f32 %v871, %v1051
        %1069 = vst [vmem:[#allocation4] sm:$0xff] %v1053
        %1070 = vst [vmem:[#allocation4 + $0x8] sm:$0xff] %v1054
        %1071 = vst [vmem:[#allocation4 + $0x10] sm:$0xff] %v1055
        %1072 = vst [vmem:[#allocation4 + $0x18] sm:$0xff] %v1056
        %1073 = vst [vmem:[#allocation4 + $0x20] sm:$0xff] %v1057
        %1074 = vst [vmem:[#allocation4 + $0x28] sm:$0xff] %v1058
        %1075 = vst [vmem:[#allocation4 + $0x30] sm:$0xff] %v1059
        %1076 = vst [vmem:[#allocation4 + $0x38] sm:$0xff] %v1060
        %1077 = vst [vmem:[#allocation4 + $0x40] sm:$0xff] %v1061
        %1078 = vst [vmem:[#allocation4 + $0x48] sm:$0xff] %v1062
        %1079 = vst [vmem:[#allocation4 + $0x50] sm:$0xff] %v1063
        %1080 = vst [vmem:[#allocation4 + $0x58] sm:$0xff] %v1064
        %1081 = vst [vmem:[#allocation4 + $0x60] sm:$0xff] %v1065
        %1082 = vst [vmem:[#allocation4 + $0x68] sm:$0xff] %v1066
        %1083 = vst [vmem:[#allocation4 + $0x70] sm:$0xff] %v1067
        %1084 = vst [vmem:[#allocation4 + $0x78] sm:$0xff] %v1068
        %p1085 = scmp.eq.s32.totalorder %s29, 1
        %p1086 = pnand %p836, %p1085
        %p1087 = pneg %p1086
        // Predicated region
        $region69: #{tpu_custom_call.1} parent=39 // pred_check
          _
        $region70: #{tpu_custom_call.1} parent=39 // pred_check_branch
          %1089 = sbr.rel (%p1086) target = $region72
        $region71: #{tpu_custom_call.1} parent=39 // pred_region
          %v1090 = vld [vmem:[#allocation4] sm:$0xff]
          %v1091 = vld [vmem:[#allocation4 + $0x8] sm:$0xff]
          %v1092 = vld [vmem:[#allocation4 + $0x10] sm:$0xff]
          %v1093 = vld [vmem:[#allocation4 + $0x18] sm:$0xff]
          %v1094 = vld [vmem:[#allocation4 + $0x20] sm:$0xff]
          %v1095 = vld [vmem:[#allocation4 + $0x28] sm:$0xff]
          %v1096 = vld [vmem:[#allocation4 + $0x30] sm:$0xff]
          %v1097 = vld [vmem:[#allocation4 + $0x38] sm:$0xff]
          %v1098 = vld [vmem:[#allocation4 + $0x40] sm:$0xff]
          %v1099 = vld [vmem:[#allocation4 + $0x48] sm:$0xff]
          %v1100 = vld [vmem:[#allocation4 + $0x50] sm:$0xff]
          %v1101 = vld [vmem:[#allocation4 + $0x58] sm:$0xff]
          %v1102 = vld [vmem:[#allocation4 + $0x60] sm:$0xff]
          %v1103 = vld [vmem:[#allocation4 + $0x68] sm:$0xff]
          %v1104 = vld [vmem:[#allocation4 + $0x70] sm:$0xff]
          %v1105 = vld [vmem:[#allocation4 + $0x78] sm:$0xff]
          %v1106 = vld [vmem:[%s394] sm:$0x1]
          %v1108 = vperm.slane %v1106, 0
          %v1110 = vmul.f32 %v1090, %v1108
          %v1111 = vmul.f32 %v1091, %v1108
          %v1112 = vmul.f32 %v1092, %v1108
          %v1113 = vmul.f32 %v1093, %v1108
          %v1114 = vmul.f32 %v1094, %v1108
          %v1115 = vmul.f32 %v1095, %v1108
          %v1116 = vmul.f32 %v1096, %v1108
          %v1117 = vmul.f32 %v1097, %v1108
          %v1118 = vmul.f32 %v1098, %v1108
          %v1119 = vmul.f32 %v1099, %v1108
          %v1120 = vmul.f32 %v1100, %v1108
          %v1121 = vmul.f32 %v1101, %v1108
          %v1122 = vmul.f32 %v1102, %v1108
          %v1123 = vmul.f32 %v1103, %v1108
          %v1124 = vmul.f32 %v1104, %v1108
          %v1125 = vmul.f32 %v1105, %v1108
          %v1126 = vld [vmem:[%s350] sm:$0x1]
          %v1128 = vperm.slane %v1126, 0
          %v1130 = vadd.f32 %v1110, %v1128
          %v1131 = vadd.f32 %v1111, %v1128
          %v1132 = vadd.f32 %v1112, %v1128
          %v1133 = vadd.f32 %v1113, %v1128
          %v1134 = vadd.f32 %v1114, %v1128
          %v1135 = vadd.f32 %v1115, %v1128
          %v1136 = vadd.f32 %v1116, %v1128
          %v1137 = vadd.f32 %v1117, %v1128
          %v1138 = vadd.f32 %v1118, %v1128
          %v1139 = vadd.f32 %v1119, %v1128
          %v1140 = vadd.f32 %v1120, %v1128
          %v1141 = vadd.f32 %v1121, %v1128
          %v1142 = vadd.f32 %v1122, %v1128
          %v1143 = vadd.f32 %v1123, %v1128
          %v1144 = vadd.f32 %v1124, %v1128
          %v1145 = vadd.f32 %v1125, %v1128
          %1146 = vst [vmem:[#allocation13] sm:$0xff] %v1130
          %1147 = vst [vmem:[#allocation13 + $0x8] sm:$0xff] %v1131
          %1148 = vst [vmem:[#allocation13 + $0x10] sm:$0xff] %v1132
          %1149 = vst [vmem:[#allocation13 + $0x18] sm:$0xff] %v1133
          %1150 = vst [vmem:[#allocation13 + $0x20] sm:$0xff] %v1134
          %1151 = vst [vmem:[#allocation13 + $0x28] sm:$0xff] %v1135
          %1152 = vst [vmem:[#allocation13 + $0x30] sm:$0xff] %v1136
          %1153 = vst [vmem:[#allocation13 + $0x38] sm:$0xff] %v1137
          %1154 = vst [vmem:[#allocation13 + $0x40] sm:$0xff] %v1138
          %1155 = vst [vmem:[#allocation13 + $0x48] sm:$0xff] %v1139
          %1156 = vst [vmem:[#allocation13 + $0x50] sm:$0xff] %v1140
          %1157 = vst [vmem:[#allocation13 + $0x58] sm:$0xff] %v1141
          %1158 = vst [vmem:[#allocation13 + $0x60] sm:$0xff] %v1142
          %1159 = vst [vmem:[#allocation13 + $0x68] sm:$0xff] %v1143
          %1160 = vst [vmem:[#allocation13 + $0x70] sm:$0xff] %v1144
          %1161 = vst [vmem:[#allocation13 + $0x78] sm:$0xff] %v1145
        $region72: #{tpu_custom_call.1} parent=39 // pred_fallthru
          _
        %p1162 = scmp.ne.s32.totalorder %s29, 1
        %p1163 = pnand %p836, %p1162
        %p1164 = pneg %p1163
        // Predicated region
        $region73: #{tpu_custom_call.1} parent=39 // pred_check
          _
        $region74: #{tpu_custom_call.1} parent=39 // pred_check_branch
          %1166 = sbr.rel (%p1163) target = $region76
        $region75: #{tpu_custom_call.1} parent=39 // pred_region
          %v1167 = vld [vmem:[#allocation4] sm:$0xff]
          %v1168 = vld [vmem:[#allocation4 + $0x8] sm:$0xff]
          %v1169 = vld [vmem:[#allocation4 + $0x10] sm:$0xff]
          %v1170 = vld [vmem:[#allocation4 + $0x18] sm:$0xff]
          %v1171 = vld [vmem:[#allocation4 + $0x20] sm:$0xff]
          %v1172 = vld [vmem:[#allocation4 + $0x28] sm:$0xff]
          %v1173 = vld [vmem:[#allocation4 + $0x30] sm:$0xff]
          %v1174 = vld [vmem:[#allocation4 + $0x38] sm:$0xff]
          %v1175 = vld [vmem:[#allocation4 + $0x40] sm:$0xff]
          %v1176 = vld [vmem:[#allocation4 + $0x48] sm:$0xff]
          %v1177 = vld [vmem:[#allocation4 + $0x50] sm:$0xff]
          %v1178 = vld [vmem:[#allocation4 + $0x58] sm:$0xff]
          %v1179 = vld [vmem:[#allocation4 + $0x60] sm:$0xff]
          %v1180 = vld [vmem:[#allocation4 + $0x68] sm:$0xff]
          %v1181 = vld [vmem:[#allocation4 + $0x70] sm:$0xff]
          %v1182 = vld [vmem:[#allocation4 + $0x78] sm:$0xff]
          %v1183 = vld [vmem:[%s394] sm:$0x1]
          %v1185 = vperm.slane %v1183, 0
          %v1187 = vmul.f32 %v1167, %v1185
          %v1188 = vmul.f32 %v1168, %v1185
          %v1189 = vmul.f32 %v1169, %v1185
          %v1190 = vmul.f32 %v1170, %v1185
          %v1191 = vmul.f32 %v1171, %v1185
          %v1192 = vmul.f32 %v1172, %v1185
          %v1193 = vmul.f32 %v1173, %v1185
          %v1194 = vmul.f32 %v1174, %v1185
          %v1195 = vmul.f32 %v1175, %v1185
          %v1196 = vmul.f32 %v1176, %v1185
          %v1197 = vmul.f32 %v1177, %v1185
          %v1198 = vmul.f32 %v1178, %v1185
          %v1199 = vmul.f32 %v1179, %v1185
          %v1200 = vmul.f32 %v1180, %v1185
          %v1201 = vmul.f32 %v1181, %v1185
          %v1202 = vmul.f32 %v1182, %v1185
          %v1203 = vld [vmem:[%s350] sm:$0x1]
          %v1205 = vperm.slane %v1203, 0
          %v1207 = vadd.f32 %v1187, %v1205
          %v1208 = vadd.f32 %v1188, %v1205
          %v1209 = vadd.f32 %v1189, %v1205
          %v1210 = vadd.f32 %v1190, %v1205
          %v1211 = vadd.f32 %v1191, %v1205
          %v1212 = vadd.f32 %v1192, %v1205
          %v1213 = vadd.f32 %v1193, %v1205
          %v1214 = vadd.f32 %v1194, %v1205
          %v1215 = vadd.f32 %v1195, %v1205
          %v1216 = vadd.f32 %v1196, %v1205
          %v1217 = vadd.f32 %v1197, %v1205
          %v1218 = vadd.f32 %v1198, %v1205
          %v1219 = vadd.f32 %v1199, %v1205
          %v1220 = vadd.f32 %v1200, %v1205
          %v1221 = vadd.f32 %v1201, %v1205
          %v1222 = vadd.f32 %v1202, %v1205
          %v1223 = vmax.f32 %v1207, 0.0
          %v1224 = vmax.f32 %v1208, 0.0
          %v1225 = vmax.f32 %v1209, 0.0
          %v1226 = vmax.f32 %v1210, 0.0
          %v1227 = vmax.f32 %v1211, 0.0
          %v1228 = vmax.f32 %v1212, 0.0
          %v1229 = vmax.f32 %v1213, 0.0
          %v1230 = vmax.f32 %v1214, 0.0
          %v1231 = vmax.f32 %v1215, 0.0
          %v1232 = vmax.f32 %v1216, 0.0
          %v1233 = vmax.f32 %v1217, 0.0
          %v1234 = vmax.f32 %v1218, 0.0
          %v1235 = vmax.f32 %v1219, 0.0
          %v1236 = vmax.f32 %v1220, 0.0
          %v1237 = vmax.f32 %v1221, 0.0
          %v1238 = vmax.f32 %v1222, 0.0
          %s1239 = smul.u32 %s30, 128
          %v1240 = vpack.c.bf16 %v1223, %v1223
          %v1241 = vpack.c.bf16 %v1224, %v1224
          %v1242 = vpack.c.bf16 %v1225, %v1225
          %v1243 = vpack.c.bf16 %v1226, %v1226
          %v1244 = vpack.c.bf16 %v1227, %v1227
          %v1245 = vpack.c.bf16 %v1228, %v1228
          %v1246 = vpack.c.bf16 %v1229, %v1229
          %v1247 = vpack.c.bf16 %v1230, %v1230
          %v1248 = vpack.c.bf16 %v1231, %v1231
          %v1249 = vpack.c.bf16 %v1232, %v1232
          %v1250 = vpack.c.bf16 %v1233, %v1233
          %v1251 = vpack.c.bf16 %v1234, %v1234
          %v1252 = vpack.c.bf16 %v1235, %v1235
          %v1253 = vpack.c.bf16 %v1236, %v1236
          %v1254 = vpack.c.bf16 %v1237, %v1237
          %v1255 = vpack.c.bf16 %v1238, %v1238
          %s1256 = sshra.s32 %s1239, 3
          %s1257 = sand.u32 %s1239, 7
          %s1258 = smul.addr %s1256, 4
          %s1259 = scalar_lea.vmem [#allocation3], %s1258
          %1260 = vst [vmem:[%s1259] sm:$0xf] %v1240
          %1261 = vst [vmem:[%s1259 + $0x4] sm:$0xf] %v1241
          %1262 = vst [vmem:[%s1259 + $0x8] sm:$0xf] %v1242
          %1263 = vst [vmem:[%s1259 + $0xc] sm:$0xf] %v1243
          %1264 = vst [vmem:[%s1259 + $0x10] sm:$0xf] %v1244
          %1265 = vst [vmem:[%s1259 + $0x14] sm:$0xf] %v1245
          %1266 = vst [vmem:[%s1259 + $0x18] sm:$0xf] %v1246
          %1267 = vst [vmem:[%s1259 + $0x1c] sm:$0xf] %v1247
          %1268 = vst [vmem:[%s1259 + $0x20] sm:$0xf] %v1248
          %1269 = vst [vmem:[%s1259 + $0x24] sm:$0xf] %v1249
          %1270 = vst [vmem:[%s1259 + $0x28] sm:$0xf] %v1250
          %1271 = vst [vmem:[%s1259 + $0x2c] sm:$0xf] %v1251
          %1272 = vst [vmem:[%s1259 + $0x30] sm:$0xf] %v1252
          %1273 = vst [vmem:[%s1259 + $0x34] sm:$0xf] %v1253
          %1274 = vst [vmem:[%s1259 + $0x38] sm:$0xf] %v1254
          %1275 = vst [vmem:[%s1259 + $0x3c] sm:$0xf] %v1255
        $region76: #{tpu_custom_call.1} parent=39 // pred_fallthru
          _
        // Predicated region
        $region77: #{tpu_custom_call.1} parent=39 // pred_check
          %p1276 = pneg %p203
        $region78: #{tpu_custom_call.1} parent=39 // pred_check_branch
          %1278 = sbr.rel (%p1276) target = $region80
        $region79: #{tpu_custom_call.1} parent=39 // pred_region
          %s1279 = smul.u32 16, %s30
          %1281 = vsyncadd [#allocation7], 0
          %s1282 = smul.addr %s1279, 8
          %s1283 = scalar_lea.hbm %s5, %s1282
          %s1284 = sshll.u32 [#allocation13], 4
          %s1285 = int_to_ptr.vmem [resolvable:$true] %s1284
          %s1286 = sshll.u32 %s1283, 4
          %s1287 = int_to_ptr.hbm [resolvable:$true] %s1286
          %1292 = dma.vmem_to_hbm [thread:$0]  %s1285, 2048, %s1287, [#allocation7], 128, 128, 8
        $region80: #{tpu_custom_call.1} parent=39 // pred_fallthru
          _
        // Predicated region
        $region81: #{tpu_custom_call.1} parent=39 // pred_check
          %p1293 = pneg %p203
        $region82: #{tpu_custom_call.1} parent=39 // pred_check_branch
          %1295 = sbr.rel (%p1293) target = $region84
        $region83: #{tpu_custom_call.1} parent=39 // pred_region
          %1297 = dma.done [#allocation7], 2048
        $region84: #{tpu_custom_call.1} parent=39 // pred_fallthru
          _
      $region40: #{tpu_custom_call.1} parent=5 // pred_fallthru
        _
      %p1298 = scmp.le.s32.totalorder 2, %s19
      // Predicated region
      $region85: #{tpu_custom_call.1} parent=5 // pred_check
        %p1299 = pneg %p1298
      $region86: #{tpu_custom_call.1} parent=5 // pred_check_branch
        %1301 = sbr.rel (%p1299) target = $region88
      $region87: #{tpu_custom_call.1} parent=5 // pred_region
        %s1302 = ssub.s32 %s19, 2
      $region88: #{tpu_custom_call.1} parent=5 // pred_fallthru
        _
    $region6: #{tpu_custom_call.1} parent=1 // loop_footer
      %s23 = sadd.s32 1, %s19
    $region7: #{tpu_custom_call.1} parent=1 // loop_footer_branch
      %18 = sbr.rel target = $region3
    $region8: #{tpu_custom_call.1} parent=1 // loop_exit
      _
    %1303 = vsyncpa [#allocation6], 1
    %s1304 = scalar_lea.sflag [#allocation6], 1
    %1305 = vsyncpa %s1304, 1
    %1306 = vsyncpa [#allocation9], 1
    %s1307 = scalar_lea.sflag [#allocation9], 1
    %1308 = vsyncpa %s1307, 1
    %1309 = vsyncpa [#allocation12], 1
    %s1310 = scalar_lea.sflag [#allocation12], 1
    %1311 = vsyncpa %s1310, 1
    %1312 = vsyncpa [#allocation7], 1
    %s1313 = scalar_lea.sflag [#allocation7], 1
    %1314 = vsyncpa %s1313, 1

</llo_original>
